<compile_context>
chip_gen: v7x
topology: tpu7x:2x2x1
jax: 0.10.0
libtpu: 0.0.40
codegen_flags: <defaults>
</compile_context>

<pallas_src>
import functools

import jax
import jax.numpy as jnp
from jax.experimental import pallas as pl
from jax.experimental.pallas import tpu as pltpu

_LANE = 128  # lane width: last-dim tiling unit
_SUBLANE = 8


def _round_up(n, m):
    return ((n + m - 1) // m) * m


def _pad_axis(a, axis, multiple):
    """Zero-pad `a` along `axis` up to the next multiple of `multiple`."""
    pad = (-a.shape[axis]) % multiple
    if pad == 0:
        return a
    widths = [(0, 0)] * a.ndim
    widths[axis] = (0, pad)
    return jnp.pad(a, widths)


def prepare_generator_params(w1, b1, w2, b2, w3, b3):
    """One-time preprocessing of the Generator parameters.

    Pads every feature dim up to a multiple of 128 (lane width) and casts the
    weight matrices to bf16 (native MXU operand rate; matmuls still accumulate
    in f32 inside the kernel). Zero padding is exact: padded hidden units get
    bias 0 -> relu -> 0 and feed zero weight rows downstream; padded output
    columns are sliced off in the wrapper.

    Call this once at init / after each optimizer step, NOT per forward.
    Returns (params_tuple, (d_in, hid, d_out)) where the second element holds
    the original (unpadded) sizes.
    """
    d_in, hid = w1.shape
    d_out = w3.shape[1]

    w1p = _pad_axis(_pad_axis(w1, 0, _LANE), 1, _LANE).astype(jnp.bfloat16)
    w2p = _pad_axis(_pad_axis(w2, 0, _LANE), 1, _LANE).astype(jnp.bfloat16)
    w3p = _pad_axis(_pad_axis(w3, 0, _LANE), 1, _LANE).astype(jnp.bfloat16)
    # Biases stay f32: the bias-add / ReLU / tanh path runs in f32 on the
    # VPU/EUP (v5e has no bf16 VPU path).
    b1p = _pad_axis(b1.reshape(1, -1), 1, _LANE).astype(jnp.float32)
    b2p = _pad_axis(b2.reshape(1, -1), 1, _LANE).astype(jnp.float32)
    b3p = _pad_axis(b3.reshape(1, -1), 1, _LANE).astype(jnp.float32)

    return (w1p, b1p, w2p, b2p, w3p, b3p), (d_in, hid, d_out)


def _generator_kernel(x_ref, w1_ref, b1_ref, w2_ref, b2_ref, w3_ref, b3_ref,
                      o_ref, *, n_sub):
    """Fused 3-layer MLP on one (block_b, d_in_p) batch tile.

    The tile is processed in `n_sub` independent row sub-tiles (static
    unrolled loop) so the VPU/EUP epilogue of one sub-tile can overlap the
    MXU matmuls of the next.
    """
    # Hoist constant loads out of the sub-tile loop.
    w1 = w1_ref[...]
    w2 = w2_ref[...]
    w3 = w3_ref[...]
    b1 = b1_ref[...]
    b2 = b2_ref[...]
    b3 = b3_ref[...]

    block_b = x_ref.shape[0]
    sub = block_b // n_sub

    for j in range(n_sub):
        rows = pl.ds(j * sub, sub)
        # x arrives f32; cast to bf16 here (free on the VPU) so the wrapper
        # doesn't need a separate cast op per call.
        xj = x_ref[rows, :].astype(jnp.bfloat16)
        # Layer 1: relu(x @ W1 + b1) — bf16 operands, f32 MXU accumulation.
        h1 = jnp.dot(xj, w1, preferred_element_type=jnp.float32)
        h1 = jnp.maximum(h1 + b1, 0.0)
        # Layer 2: relu(h1 @ W2 + b2)
        h2 = jnp.dot(h1.astype(jnp.bfloat16), w2,
                     preferred_element_type=jnp.float32)
        h2 = jnp.maximum(h2 + b2, 0.0)
        # Layer 3: tanh(h2 @ W3 + b3) — tanh on the EUP.
        h3 = jnp.dot(h2.astype(jnp.bfloat16), w3,
                     preferred_element_type=jnp.float32)
        o_ref[rows, :] = jnp.tanh(h3 + b3).astype(o_ref.dtype)


def _choose_block_b(batch):
    """Pick a batch tile: single grid step for small/medium batches, 512-row
    tiles beyond that (keeps batch-padding waste bounded and, on v7x, gives
    the 'parallel' axis multiple steps to shard across both TensorCores)."""
    b8 = _round_up(batch, _SUBLANE)
    if b8 <= 1024:
        return b8
    return 512


def _choose_n_sub(block_b):
    """2-4 sub-tiles so EUP/VPU epilogue overlaps MXU work; each sub-tile must
    stay a multiple of 8 rows (sublane)."""
    if block_b % 32 == 0 and block_b >= 128:
        return 4
    if block_b % 16 == 0:
        return 2
    return 1


@functools.partial(jax.jit, static_argnames=("block_b",))
def generator_forward(x, params, *, block_b=None):
    """x: (B, d_in) float32; params from prepare_generator_params().

    Returns (B, d_out) float32 (== tanh output of the 3-layer MLP).

    block_b: rows per grid step. The real ceiling is scoped VMEM (the f32
    intermediates are VMEM temporaries, not vregs); the explicit
    vmem_limit_bytes below is sized from the block footprint, so tiles of
    512-2048 rows are fine on all generations (kept <= ~60 MiB for v7x's
    64 MiB per-TC VMEM). Default (None) picks a size automatically.
    """
    w1p, b1p, w2p, b2p, w3p, b3p = params

    B, d_in = x.shape
    d_in_p, hid_p = w1p.shape
    d_out_p = w3p.shape[1]

    if block_b is None:
        block_b = _choose_block_b(B)
    n_sub = _choose_n_sub(block_b)

    # Per-call work on x only: lane-pad features, pad batch to a tile multiple.
    xp = _pad_axis(_pad_axis(x, 1, _LANE), 0, block_b)
    assert xp.shape[1] == d_in_p, "x feature dim does not match prepared params"
    B_p = xp.shape[0]
    grid = (B_p // block_b,)

    # Constant (grid-invariant) operands: same full block every step; single
    # buffer frees VMEM for larger batch tiles.
    def const_spec(shape):
        return pl.BlockSpec(shape, lambda i: (0, 0),
                            pipeline_mode=pl.Buffered(1))

    # VMEM budget for this block size (weights single-buffered, x/out tiles
    # double-buffered, plus headroom for the per-sub-tile f32 intermediates).
    weight_bytes = 2 * (d_in_p * hid_p + hid_p * hid_p + hid_p * d_out_p)
    bias_bytes = 4 * (2 * hid_p + d_out_p)
    x_tile_bytes = 4 * block_b * d_in_p * 2
    out_tile_bytes = 4 * block_b * d_out_p * 2
    scratch_bytes = 4 * (block_b // n_sub) * (2 * hid_p + d_out_p) * 2
    vmem_limit = int(min(
        1.25 * (weight_bytes + bias_bytes + x_tile_bytes + out_tile_bytes
                + scratch_bytes) + (4 << 20),
        60 << 20))

    flops = 2 * B_p * (d_in_p * hid_p + hid_p * hid_p + hid_p * d_out_p)
    bytes_accessed = (4 * B_p * d_in_p + weight_bytes + bias_bytes
                      + 4 * B_p * d_out_p)
    cost = pl.CostEstimate(flops=flops,
                           transcendentals=B_p * d_out_p,
                           bytes_accessed=bytes_accessed)

    out = pl.pallas_call(
        functools.partial(_generator_kernel, n_sub=n_sub),
        out_shape=jax.ShapeDtypeStruct((B_p, d_out_p), jnp.float32),
        grid_spec=pltpu.PrefetchScalarGridSpec(
            num_scalar_prefetch=0,
            grid=grid,
            in_specs=[
                pl.BlockSpec((block_b, d_in_p), lambda i: (i, 0)),  # x tile
                const_spec((d_in_p, hid_p)),                        # W1 (bf16)
                const_spec((1, hid_p)),                             # b1 (f32)
                const_spec((hid_p, hid_p)),                         # W2 (bf16)
                const_spec((1, hid_p)),                             # b2 (f32)
                const_spec((hid_p, d_out_p)),                       # W3 (bf16)
                const_spec((1, d_out_p)),                           # b3 (f32)
            ],
            out_specs=pl.BlockSpec((block_b, d_out_p), lambda i: (i, 0)),
        ),
        compiler_params=pltpu.CompilerParams(
            dimension_semantics=("parallel",),
            vmem_limit_bytes=vmem_limit),
        cost_estimate=cost,
    )(xp, w1p, b1p, w2p, b2p, w3p, b3p)

    d_out = d_out_p  # padded; slice back to the true output width
    # (w3 original width is recorded by the caller; slicing here uses B only
    #  plus the true width passed via the unpadded reference parameters.)
    return out[:B, :]


def init_linear_params(key, fan_in, fan_out):
    """Deterministic init matching PyTorch nn.Linear default:
    U(-1/sqrt(fan_in), 1/sqrt(fan_in)) for weight and bias.
    Weight returned as (fan_in, fan_out) (transposed vs. PyTorch storage)."""
    kw, kb = jax.random.split(key)
    bound = 1.0 / jnp.sqrt(fan_in)
    w = jax.random.uniform(kw, (fan_in, fan_out), jnp.float32, -bound, bound)
    b = jax.random.uniform(kb, (fan_out,), jnp.float32, -bound, bound)
    return w, b


if __name__ == "__main__":
    # Real Generator feature dims (input_size=784, hidden_size=256) so the
    # 256-wide MXU on v6e/v7x is fully fed; small batch keeps the script fast.
    batch = 64
    input_size = 784
    hidden_size = 256

    key = jax.random.PRNGKey(0)
    k_x, k1, k2, k3 = jax.random.split(key, 4)

    x = jax.random.normal(k_x, (batch, input_size), dtype=jnp.float32)
    w1, b1 = init_linear_params(k1, input_size, hidden_size)
    w2, b2 = init_linear_params(k2, hidden_size, hidden_size)
    w3, b3 = init_linear_params(k3, hidden_size, input_size)

    # One-time parameter preprocessing (hoisted out of the forward path).
    params, (d_in, hid, d_out) = prepare_generator_params(w1, b1, w2, b2, w3, b3)
    params = jax.block_until_ready(params)

    out_padded = generator_forward(x, params)
    out_padded = jax.block_until_ready(out_padded)
    out = out_padded[:, :d_out]  # drop lane-padding columns of the output
    assert out.shape == (batch, input_size)

    # Reference 1: identical bf16-operand / f32-accumulate arithmetic.
    def ref_bf16(x, w1, b1, w2, b2, w3, b3):
        h = jnp.dot(x.astype(jnp.bfloat16), w1.astype(jnp.bfloat16),
                    preferred_element_type=jnp.float32)
        h = jnp.maximum(h + b1, 0.0)
        h = jnp.dot(h.astype(jnp.bfloat16), w2.astype(jnp.bfloat16),
                    preferred_element_type=jnp.float32)
        h = jnp.maximum(h + b2, 0.0)
        h = jnp.dot(h.astype(jnp.bfloat16), w3.astype(jnp.bfloat16),
                    preferred_element_type=jnp.float32)
        return jnp.tanh(h + b3)

    ref = ref_bf16(x, w1, b1, w2, b2, w3, b3)
    assert jnp.allclose(out, ref, atol=1e-3, rtol=1e-3), "bf16 ref mismatch"

    # Reference 2: full-f32 PyTorch-equivalent math (loose tolerance for the
    # bf16 MXU operands; output is tanh-bounded in [-1, 1]).
    ref32 = jnp.maximum(x @ w1 + b1, 0.0)
    ref32 = jnp.maximum(ref32 @ w2 + b2, 0.0)
    ref32 = jnp.tanh(ref32 @ w3 + b3)
    assert jnp.allclose(out, ref32, atol=5e-2, rtol=5e-2), "f32 ref mismatch"

    print("KERNEL_OK")
</pallas_src>

<mosaic_0001>
module attributes {stable_mosaic.version = 11 : i64} {
  func.func @_generator_kernel(%arg0: i32, %arg1: memref<64x896xf32, #tpu.memory_space<vmem>>, %arg2: memref<896x256xbf16, #tpu.memory_space<vmem>>, %arg3: memref<1x256xf32, #tpu.memory_space<vmem>>, %arg4: memref<256x256xbf16, #tpu.memory_space<vmem>>, %arg5: memref<1x256xf32, #tpu.memory_space<vmem>>, %arg6: memref<256x896xbf16, #tpu.memory_space<vmem>>, %arg7: memref<1x896xf32, #tpu.memory_space<vmem>>, %arg8: memref<64x896xf32, #tpu.memory_space<vmem>>) attributes {dimension_semantics = [#tpu.dimension_semantics<parallel>], iteration_bounds = array<i64: 1>, scalar_prefetch = 0 : i64, scratch_operands = 0 : i64, tpu.core_type = #tpu.core_type<tc>, window_params = [{transform_indices = @transform_0, window_bounds = array<i64: 64, 896>}, {pipeline_mode = #tpu.pipeline_mode<synchronous>, transform_indices = @transform_1, window_bounds = array<i64: 896, 256>}, {pipeline_mode = #tpu.pipeline_mode<synchronous>, transform_indices = @transform_2, window_bounds = array<i64: 1, 256>}, {pipeline_mode = #tpu.pipeline_mode<synchronous>, transform_indices = @transform_3, window_bounds = array<i64: 256, 256>}, {pipeline_mode = #tpu.pipeline_mode<synchronous>, transform_indices = @transform_4, window_bounds = array<i64: 1, 256>}, {pipeline_mode = #tpu.pipeline_mode<synchronous>, transform_indices = @transform_5, window_bounds = array<i64: 256, 896>}, {pipeline_mode = #tpu.pipeline_mode<synchronous>, transform_indices = @transform_6, window_bounds = array<i64: 1, 896>}, {transform_indices = @transform_7, window_bounds = array<i64: 64, 896>}]} {
    %c0 = arith.constant 0 : index
    %c0_0 = arith.constant 0 : index
    %0 = vector.load %arg2[%c0, %c0_0] : memref<896x256xbf16, #tpu.memory_space<vmem>>, vector<896x256xbf16>
    %c0_1 = arith.constant 0 : index
    %c0_2 = arith.constant 0 : index
    %1 = vector.load %arg4[%c0_1, %c0_2] : memref<256x256xbf16, #tpu.memory_space<vmem>>, vector<256x256xbf16>
    %c0_3 = arith.constant 0 : index
    %c0_4 = arith.constant 0 : index
    %2 = vector.load %arg6[%c0_3, %c0_4] : memref<256x896xbf16, #tpu.memory_space<vmem>>, vector<256x896xbf16>
    %c0_5 = arith.constant 0 : index
    %c0_6 = arith.constant 0 : index
    %3 = vector.load %arg3[%c0_5, %c0_6] : memref<1x256xf32, #tpu.memory_space<vmem>>, vector<1x256xf32>
    %c0_7 = arith.constant 0 : index
    %c0_8 = arith.constant 0 : index
    %4 = vector.load %arg5[%c0_7, %c0_8] : memref<1x256xf32, #tpu.memory_space<vmem>>, vector<1x256xf32>
    %c0_9 = arith.constant 0 : index
    %c0_10 = arith.constant 0 : index
    %5 = vector.load %arg7[%c0_9, %c0_10] : memref<1x896xf32, #tpu.memory_space<vmem>>, vector<1x896xf32>
    %c0_11 = arith.constant 0 : index
    %c0_12 = arith.constant 0 : index
    %6 = vector.load %arg1[%c0_11, %c0_12] : memref<64x896xf32, #tpu.memory_space<vmem>>, vector<32x896xf32>
    %7 = arith.truncf %6 : vector<32x896xf32> to vector<32x896xbf16>
    %cst = arith.constant dense<0.000000e+00> : vector<32x256xf32>
    %8 = tpu.matmul %7, %0, %cst {dimension_numbers = #tpu.dot_dimension_numbers<[1], [0], [0], [1], [0, 0, 1, 1], [], []>} : vector<32x896xbf16>, vector<896x256xbf16>, vector<32x256xf32> -> vector<32x256xf32>
    %9 = vector.broadcast %3 : vector<1x256xf32> to vector<32x256xf32>
    %10 = arith.addf %8, %9 : vector<32x256xf32>
    %cst_13 = arith.constant 0.000000e+00 : f32
    %11 = vector.broadcast %cst_13 : f32 to vector<32x256xf32>
    %12 = arith.maximumf %10, %11 : vector<32x256xf32>
    %13 = arith.truncf %12 : vector<32x256xf32> to vector<32x256xbf16>
    %cst_14 = arith.constant dense<0.000000e+00> : vector<32x256xf32>
    %14 = tpu.matmul %13, %1, %cst_14 {dimension_numbers = #tpu.dot_dimension_numbers<[1], [0], [0], [1], [0, 0, 1, 1], [], []>} : vector<32x256xbf16>, vector<256x256xbf16>, vector<32x256xf32> -> vector<32x256xf32>
    %15 = vector.broadcast %4 : vector<1x256xf32> to vector<32x256xf32>
    %16 = arith.addf %14, %15 : vector<32x256xf32>
    %cst_15 = arith.constant 0.000000e+00 : f32
    %17 = vector.broadcast %cst_15 : f32 to vector<32x256xf32>
    %18 = arith.maximumf %16, %17 : vector<32x256xf32>
    %19 = arith.truncf %18 : vector<32x256xf32> to vector<32x256xbf16>
    %cst_16 = arith.constant dense<0.000000e+00> : vector<32x896xf32>
    %20 = tpu.matmul %19, %2, %cst_16 {dimension_numbers = #tpu.dot_dimension_numbers<[1], [0], [0], [1], [0, 0, 1, 1], [], []>} : vector<32x256xbf16>, vector<256x896xbf16>, vector<32x896xf32> -> vector<32x896xf32>
    %21 = vector.broadcast %5 : vector<1x896xf32> to vector<32x896xf32>
    %22 = arith.addf %20, %21 : vector<32x896xf32>
    %23 = math.tanh %22 : vector<32x896xf32>
    %c0_17 = arith.constant 0 : index
    %c0_18 = arith.constant 0 : index
    %24 = vector.load %arg8[%c0_17, %c0_18] : memref<64x896xf32, #tpu.memory_space<vmem>>, vector<32x896xf32>
    tpu.vector_store %arg8[%c0_17, %c0_18], %23 {strides = array<i32>} : memref<64x896xf32, #tpu.memory_space<vmem>>, vector<32x896xf32>,
    %c32 = arith.constant 32 : index
    %c0_19 = arith.constant 0 : index
    %25 = vector.load %arg1[%c32, %c0_19] : memref<64x896xf32, #tpu.memory_space<vmem>>, vector<32x896xf32>
    %26 = arith.truncf %25 : vector<32x896xf32> to vector<32x896xbf16>
    %cst_20 = arith.constant dense<0.000000e+00> : vector<32x256xf32>
    %27 = tpu.matmul %26, %0, %cst_20 {dimension_numbers = #tpu.dot_dimension_numbers<[1], [0], [0], [1], [0, 0, 1, 1], [], []>} : vector<32x896xbf16>, vector<896x256xbf16>, vector<32x256xf32> -> vector<32x256xf32>
    %28 = vector.broadcast %3 : vector<1x256xf32> to vector<32x256xf32>
    %29 = arith.addf %27, %28 : vector<32x256xf32>
    %cst_21 = arith.constant 0.000000e+00 : f32
    %30 = vector.broadcast %cst_21 : f32 to vector<32x256xf32>
    %31 = arith.maximumf %29, %30 : vector<32x256xf32>
    %32 = arith.truncf %31 : vector<32x256xf32> to vector<32x256xbf16>
    %cst_22 = arith.constant dense<0.000000e+00> : vector<32x256xf32>
    %33 = tpu.matmul %32, %1, %cst_22 {dimension_numbers = #tpu.dot_dimension_numbers<[1], [0], [0], [1], [0, 0, 1, 1], [], []>} : vector<32x256xbf16>, vector<256x256xbf16>, vector<32x256xf32> -> vector<32x256xf32>
    %34 = vector.broadcast %4 : vector<1x256xf32> to vector<32x256xf32>
    %35 = arith.addf %33, %34 : vector<32x256xf32>
    %cst_23 = arith.constant 0.000000e+00 : f32
    %36 = vector.broadcast %cst_23 : f32 to vector<32x256xf32>
    %37 = arith.maximumf %35, %36 : vector<32x256xf32>
    %38 = arith.truncf %37 : vector<32x256xf32> to vector<32x256xbf16>
    %cst_24 = arith.constant dense<0.000000e+00> : vector<32x896xf32>
    %39 = tpu.matmul %38, %2, %cst_24 {dimension_numbers = #tpu.dot_dimension_numbers<[1], [0], [0], [1], [0, 0, 1, 1], [], []>} : vector<32x256xbf16>, vector<256x896xbf16>, vector<32x896xf32> -> vector<32x896xf32>
    %40 = vector.broadcast %5 : vector<1x896xf32> to vector<32x896xf32>
    %41 = arith.addf %39, %40 : vector<32x896xf32>
    %42 = math.tanh %41 : vector<32x896xf32>
    %c32_25 = arith.constant 32 : index
    %c0_26 = arith.constant 0 : index
    %43 = vector.load %arg8[%c32_25, %c0_26] : memref<64x896xf32, #tpu.memory_space<vmem>>, vector<32x896xf32>
    tpu.vector_store %arg8[%c32_25, %c0_26], %42 {strides = array<i32>} : memref<64x896xf32, #tpu.memory_space<vmem>>, vector<32x896xf32>,
    return
  }
  func.func @transform_0(%arg0: i32) -> (i32, i32) {
    %c0_i32 = arith.constant 0 : i32
    %c0_i32_0 = arith.constant 0 : i32
    return %arg0, %c0_i32 : i32, i32
  }
  func.func @transform_1(%arg0: i32) -> (i32, i32) {
    %c0_i32 = arith.constant 0 : i32
    %c0_i32_0 = arith.constant 0 : i32
    %c0_i32_1 = arith.constant 0 : i32
    return %c0_i32, %c0_i32_0 : i32, i32
  }
  func.func @transform_2(%arg0: i32) -> (i32, i32) {
    %c0_i32 = arith.constant 0 : i32
    %c0_i32_0 = arith.constant 0 : i32
    %c0_i32_1 = arith.constant 0 : i32
    return %c0_i32, %c0_i32_0 : i32, i32
  }
  func.func @transform_3(%arg0: i32) -> (i32, i32) {
    %c0_i32 = arith.constant 0 : i32
    %c0_i32_0 = arith.constant 0 : i32
    %c0_i32_1 = arith.constant 0 : i32
    return %c0_i32, %c0_i32_0 : i32, i32
  }
  func.func @transform_4(%arg0: i32) -> (i32, i32) {
    %c0_i32 = arith.constant 0 : i32
    %c0_i32_0 = arith.constant 0 : i32
    %c0_i32_1 = arith.constant 0 : i32
    return %c0_i32, %c0_i32_0 : i32, i32
  }
  func.func @transform_5(%arg0: i32) -> (i32, i32) {
    %c0_i32 = arith.constant 0 : i32
    %c0_i32_0 = arith.constant 0 : i32
    %c0_i32_1 = arith.constant 0 : i32
    return %c0_i32, %c0_i32_0 : i32, i32
  }
  func.func @transform_6(%arg0: i32) -> (i32, i32) {
    %c0_i32 = arith.constant 0 : i32
    %c0_i32_0 = arith.constant 0 : i32
    %c0_i32_1 = arith.constant 0 : i32
    return %c0_i32, %c0_i32_0 : i32, i32
  }
  func.func @transform_7(%arg0: i32) -> (i32, i32) {
    %c0_i32 = arith.constant 0 : i32
    %c0_i32_0 = arith.constant 0 : i32
    return %arg0, %c0_i32 : i32, i32
  }
}

</mosaic_0001>

<llo_original>
// kernel: generator_forward.1
$region0: #{generator_forward.1}
  #allocation0 [shape = 'u32[]', space=smem, size = 0x4, offset = 0x4, fixed_abs, tag = 'smem constant byte address 0x4 - core index']
  #allocation1 [shape = 'u32[144,128]{1,0:T(1,128)}', space=vmem, size = 0x12000, scoped, tag = 'internal scratch']
  %s0 = inlined_call_operand.vmem [shape: f32[64,896], index: 0, kind: input, shape index: {}]
  %s1 = inlined_call_operand.vmem [shape: bf16[896,256], index: 1, kind: input, shape index: {}]
  %s2 = inlined_call_operand.vmem [shape: f32[1,256], index: 2, kind: input, shape index: {}]
  %s3 = inlined_call_operand.hbm [shape: bf16[256,256], index: 3, kind: input, shape index: {}]
  %s4 = inlined_call_operand.vmem [shape: f32[1,256], index: 4, kind: input, shape index: {}]
  %s5 = inlined_call_operand.hbm [shape: bf16[256,896], index: 5, kind: input, shape index: {}]
  %s6 = inlined_call_operand.vmem [shape: f32[1,896], index: 6, kind: input, shape index: {}]
  %s7 = inlined_call_operand.hbm [shape: f32[64,896], index: 7, kind: output, shape index: {}]
  %s8 = sld [smem:[#allocation0]]
  $region46: #{generator_forward.1} parent=0
    _
  %s10 = ssub.s32 1, %s8
  %s11 = scalar_select 0, %s10, %s8
  $region1: #{generator_forward.1} parent=0
    #allocation2 [shape = 'u8[131072]{0}', space=vmem, size = 0x20000, scoped, tag = 'input window, operand 3, single buffered']
    #allocation3 [shape = 's32[1]{0}', space=sflag, size = 0x4, scoped, tag = 'scoped memory for generator_forward.1']
    #allocation4 [shape = 's32[1]{0}', space=sflag, size = 0x4, scoped, tag = 'scoped memory for generator_forward.1']
    #allocation5 [shape = 'u8[458752]{0}', space=vmem, size = 0x70000, scoped, tag = 'input window, operand 5, single buffered']
    #allocation6 [shape = 's32[1]{0}', space=sflag, size = 0x4, scoped, tag = 'scoped memory for generator_forward.1']
    #allocation7 [shape = 'u8[229376]{0}', space=vmem, size = 0x38000, scoped, tag = 'output window, operand 0, single buffered']
    %12 = vsyncpa [#allocation3], 0
    %13 = vsyncpa [#allocation6], 0
    %14 = vsyncpa [#allocation4], 0
    // Predicated region
    $region2: #{generator_forward.1} parent=1 // pred_check
      _
    $region3: #{generator_forward.1} parent=1 // pred_check_branch
      %16 = sbr.rel (0) target = $region5
    $region4: #{generator_forward.1} parent=1 // pred_region
      _
    $region5: #{generator_forward.1} parent=1 // pred_fallthru
      _
    // Predicated region
    $region6: #{generator_forward.1} parent=1 // pred_check
      _
    $region7: #{generator_forward.1} parent=1 // pred_check_branch
      %18 = sbr.rel (0) target = $region9
    $region8: #{generator_forward.1} parent=1 // pred_region
      _
    $region9: #{generator_forward.1} parent=1 // pred_fallthru
      _
    // Predicated region
    $region10: #{generator_forward.1} parent=1 // pred_check
      _
    $region11: #{generator_forward.1} parent=1 // pred_check_branch
      %20 = sbr.rel (0) target = $region13
    $region12: #{generator_forward.1} parent=1 // pred_region
      _
    $region13: #{generator_forward.1} parent=1 // pred_fallthru
      _
    // Predicated region
    $region14: #{generator_forward.1} parent=1 // pred_check
      _
    $region15: #{generator_forward.1} parent=1 // pred_check_branch
      %22 = sbr.rel (0) target = $region17
    $region16: #{generator_forward.1} parent=1 // pred_region
      %s24 = ssub.s32 4096, 4096
      %25 = vsyncadd [#allocation3], %s24
      %s26 = sshll.u32 [#allocation2], 4
      %s27 = int_to_ptr.vmem [resolvable:$true] %s26
      %32 = dma.hbm_to_vmem [thread:$0]  %s3, 4096, %s27, [#allocation3], 128, 128, 8
    $region17: #{generator_forward.1} parent=1 // pred_fallthru
      _
    // Predicated region
    $region18: #{generator_forward.1} parent=1 // pred_check
      _
    $region19: #{generator_forward.1} parent=1 // pred_check_branch
      %34 = sbr.rel (0) target = $region21
    $region20: #{generator_forward.1} parent=1 // pred_region
      _
    $region21: #{generator_forward.1} parent=1 // pred_fallthru
      _
    // Predicated region
    $region22: #{generator_forward.1} parent=1 // pred_check
      _
    $region23: #{generator_forward.1} parent=1 // pred_check_branch
      %36 = sbr.rel (0) target = $region25
    $region24: #{generator_forward.1} parent=1 // pred_region
      %s38 = ssub.s32 14336, 14336
      %39 = vsyncadd [#allocation6], %s38
      %s40 = sshll.u32 [#allocation5], 4
      %s41 = int_to_ptr.vmem [resolvable:$true] %s40
      %46 = dma.hbm_to_vmem [thread:$0]  %s5, 14336, %s41, [#allocation6], 448, 448, 28
    $region25: #{generator_forward.1} parent=1 // pred_fallthru
      _
    // Predicated region
    $region26: #{generator_forward.1} parent=1 // pred_check
      _
    $region27: #{generator_forward.1} parent=1 // pred_check_branch
      %48 = sbr.rel (0) target = $region29
    $region28: #{generator_forward.1} parent=1 // pred_region
      _
    $region29: #{generator_forward.1} parent=1 // pred_fallthru
      _
    // Predicated region
    $region30: #{generator_forward.1} parent=1 // pred_check
      _
    $region31: #{generator_forward.1} parent=1 // pred_check_branch
      %50 = sbr.rel (0) target = $region33
    $region32: #{generator_forward.1} parent=1 // pred_region
      %51 = dma.done [#allocation3], 4096
    $region33: #{generator_forward.1} parent=1 // pred_fallthru
      _
    // Predicated region
    $region34: #{generator_forward.1} parent=1 // pred_check
      _
    $region35: #{generator_forward.1} parent=1 // pred_check_branch
      %53 = sbr.rel (0) target = $region37
    $region36: #{generator_forward.1} parent=1 // pred_region
      %54 = dma.done [#allocation6], 14336
    $region37: #{generator_forward.1} parent=1 // pred_fallthru
      _
    %v56 = vld [vmem:[%s1] sm:$0xff]
    %v57 = vld [vmem:[%s1 + $0x8] sm:$0xff]
    %v58 = vld [vmem:[%s1 + $0x10] sm:$0xff]
    %v59 = vld [vmem:[%s1 + $0x18] sm:$0xff]
    %v60 = vld [vmem:[%s1 + $0x20] sm:$0xff]
    %v61 = vld [vmem:[%s1 + $0x28] sm:$0xff]
    %v62 = vld [vmem:[%s1 + $0x30] sm:$0xff]
    %v63 = vld [vmem:[%s1 + $0x38] sm:$0xff]
    %v64 = vld [vmem:[%s1 + $0x40] sm:$0xff]
    %v65 = vld [vmem:[%s1 + $0x48] sm:$0xff]
    %v66 = vld [vmem:[%s1 + $0x50] sm:$0xff]
    %v67 = vld [vmem:[%s1 + $0x58] sm:$0xff]
    %v68 = vld [vmem:[%s1 + $0x60] sm:$0xff]
    %v69 = vld [vmem:[%s1 + $0x68] sm:$0xff]
    %v70 = vld [vmem:[%s1 + $0x70] sm:$0xff]
    %v71 = vld [vmem:[%s1 + $0x78] sm:$0xff]
    %v72 = vld [vmem:[%s1 + $0x80] sm:$0xff]
    %v73 = vld [vmem:[%s1 + $0x88] sm:$0xff]
    %v74 = vld [vmem:[%s1 + $0x90] sm:$0xff]
    %v75 = vld [vmem:[%s1 + $0x98] sm:$0xff]
    %v76 = vld [vmem:[%s1 + $0xa0] sm:$0xff]
    %v77 = vld [vmem:[%s1 + $0xa8] sm:$0xff]
    %v78 = vld [vmem:[%s1 + $0xb0] sm:$0xff]
    %v79 = vld [vmem:[%s1 + $0xb8] sm:$0xff]
    %v80 = vld [vmem:[%s1 + $0xc0] sm:$0xff]
    %v81 = vld [vmem:[%s1 + $0xc8] sm:$0xff]
    %v82 = vld [vmem:[%s1 + $0xd0] sm:$0xff]
    %v83 = vld [vmem:[%s1 + $0xd8] sm:$0xff]
    %v84 = vld [vmem:[%s1 + $0xe0] sm:$0xff]
    %v85 = vld [vmem:[%s1 + $0xe8] sm:$0xff]
    %v86 = vld [vmem:[%s1 + $0xf0] sm:$0xff]
    %v87 = vld [vmem:[%s1 + $0xf8] sm:$0xff]
    %v88 = vld [vmem:[%s1 + $0x100] sm:$0xff]
    %v89 = vld [vmem:[%s1 + $0x108] sm:$0xff]
    %v90 = vld [vmem:[%s1 + $0x110] sm:$0xff]
    %v91 = vld [vmem:[%s1 + $0x118] sm:$0xff]
    %v92 = vld [vmem:[%s1 + $0x120] sm:$0xff]
    %v93 = vld [vmem:[%s1 + $0x128] sm:$0xff]
    %v94 = vld [vmem:[%s1 + $0x130] sm:$0xff]
    %v95 = vld [vmem:[%s1 + $0x138] sm:$0xff]
    %v96 = vld [vmem:[%s1 + $0x140] sm:$0xff]
    %v97 = vld [vmem:[%s1 + $0x148] sm:$0xff]
    %v98 = vld [vmem:[%s1 + $0x150] sm:$0xff]
    %v99 = vld [vmem:[%s1 + $0x158] sm:$0xff]
    %v100 = vld [vmem:[%s1 + $0x160] sm:$0xff]
    %v101 = vld [vmem:[%s1 + $0x168] sm:$0xff]
    %v102 = vld [vmem:[%s1 + $0x170] sm:$0xff]
    %v103 = vld [vmem:[%s1 + $0x178] sm:$0xff]
    %v104 = vld [vmem:[%s1 + $0x180] sm:$0xff]
    %v105 = vld [vmem:[%s1 + $0x188] sm:$0xff]
    %v106 = vld [vmem:[%s1 + $0x190] sm:$0xff]
    %v107 = vld [vmem:[%s1 + $0x198] sm:$0xff]
    %v108 = vld [vmem:[%s1 + $0x1a0] sm:$0xff]
    %v109 = vld [vmem:[%s1 + $0x1a8] sm:$0xff]
    %v110 = vld [vmem:[%s1 + $0x1b0] sm:$0xff]
    %v111 = vld [vmem:[%s1 + $0x1b8] sm:$0xff]
    %v112 = vld [vmem:[%s1 + $0x1c0] sm:$0xff]
    %v113 = vld [vmem:[%s1 + $0x1c8] sm:$0xff]
    %v114 = vld [vmem:[%s1 + $0x1d0] sm:$0xff]
    %v115 = vld [vmem:[%s1 + $0x1d8] sm:$0xff]
    %v116 = vld [vmem:[%s1 + $0x1e0] sm:$0xff]
    %v117 = vld [vmem:[%s1 + $0x1e8] sm:$0xff]
    %v118 = vld [vmem:[%s1 + $0x1f0] sm:$0xff]
    %v119 = vld [vmem:[%s1 + $0x1f8] sm:$0xff]
    %v120 = vld [vmem:[%s1 + $0x200] sm:$0xff]
    %v121 = vld [vmem:[%s1 + $0x208] sm:$0xff]
    %v122 = vld [vmem:[%s1 + $0x210] sm:$0xff]
    %v123 = vld [vmem:[%s1 + $0x218] sm:$0xff]
    %v124 = vld [vmem:[%s1 + $0x220] sm:$0xff]
    %v125 = vld [vmem:[%s1 + $0x228] sm:$0xff]
    %v126 = vld [vmem:[%s1 + $0x230] sm:$0xff]
    %v127 = vld [vmem:[%s1 + $0x238] sm:$0xff]
    %v128 = vld [vmem:[%s1 + $0x240] sm:$0xff]
    %v129 = vld [vmem:[%s1 + $0x248] sm:$0xff]
    %v130 = vld [vmem:[%s1 + $0x250] sm:$0xff]
    %v131 = vld [vmem:[%s1 + $0x258] sm:$0xff]
    %v132 = vld [vmem:[%s1 + $0x260] sm:$0xff]
    %v133 = vld [vmem:[%s1 + $0x268] sm:$0xff]
    %v134 = vld [vmem:[%s1 + $0x270] sm:$0xff]
    %v135 = vld [vmem:[%s1 + $0x278] sm:$0xff]
    %v136 = vld [vmem:[%s1 + $0x280] sm:$0xff]
    %v137 = vld [vmem:[%s1 + $0x288] sm:$0xff]
    %v138 = vld [vmem:[%s1 + $0x290] sm:$0xff]
    %v139 = vld [vmem:[%s1 + $0x298] sm:$0xff]
    %v140 = vld [vmem:[%s1 + $0x2a0] sm:$0xff]
    %v141 = vld [vmem:[%s1 + $0x2a8] sm:$0xff]
    %v142 = vld [vmem:[%s1 + $0x2b0] sm:$0xff]
    %v143 = vld [vmem:[%s1 + $0x2b8] sm:$0xff]
    %v144 = vld [vmem:[%s1 + $0x2c0] sm:$0xff]
    %v145 = vld [vmem:[%s1 + $0x2c8] sm:$0xff]
    %v146 = vld [vmem:[%s1 + $0x2d0] sm:$0xff]
    %v147 = vld [vmem:[%s1 + $0x2d8] sm:$0xff]
    %v148 = vld [vmem:[%s1 + $0x2e0] sm:$0xff]
    %v149 = vld [vmem:[%s1 + $0x2e8] sm:$0xff]
    %v150 = vld [vmem:[%s1 + $0x2f0] sm:$0xff]
    %v151 = vld [vmem:[%s1 + $0x2f8] sm:$0xff]
    %v152 = vld [vmem:[%s1 + $0x300] sm:$0xff]
    %v153 = vld [vmem:[%s1 + $0x308] sm:$0xff]
    %v154 = vld [vmem:[%s1 + $0x310] sm:$0xff]
    %v155 = vld [vmem:[%s1 + $0x318] sm:$0xff]
    %v156 = vld [vmem:[%s1 + $0x320] sm:$0xff]
    %v157 = vld [vmem:[%s1 + $0x328] sm:$0xff]
    %v158 = vld [vmem:[%s1 + $0x330] sm:$0xff]
    %v159 = vld [vmem:[%s1 + $0x338] sm:$0xff]
    %v160 = vld [vmem:[%s1 + $0x340] sm:$0xff]
    %v161 = vld [vmem:[%s1 + $0x348] sm:$0xff]
    %v162 = vld [vmem:[%s1 + $0x350] sm:$0xff]
    %v163 = vld [vmem:[%s1 + $0x358] sm:$0xff]
    %v164 = vld [vmem:[%s1 + $0x360] sm:$0xff]
    %v165 = vld [vmem:[%s1 + $0x368] sm:$0xff]
    %v166 = vld [vmem:[%s1 + $0x370] sm:$0xff]
    %v167 = vld [vmem:[%s1 + $0x378] sm:$0xff]
    %v168 = vld [vmem:[#allocation2] sm:$0xff]
    %v169 = vld [vmem:[#allocation2 + $0x8] sm:$0xff]
    %v170 = vld [vmem:[#allocation2 + $0x10] sm:$0xff]
    %v171 = vld [vmem:[#allocation2 + $0x18] sm:$0xff]
    %v172 = vld [vmem:[#allocation2 + $0x20] sm:$0xff]
    %v173 = vld [vmem:[#allocation2 + $0x28] sm:$0xff]
    %v174 = vld [vmem:[#allocation2 + $0x30] sm:$0xff]
    %v175 = vld [vmem:[#allocation2 + $0x38] sm:$0xff]
    %v176 = vld [vmem:[#allocation2 + $0x40] sm:$0xff]
    %v177 = vld [vmem:[#allocation2 + $0x48] sm:$0xff]
    %v178 = vld [vmem:[#allocation2 + $0x50] sm:$0xff]
    %v179 = vld [vmem:[#allocation2 + $0x58] sm:$0xff]
    %v180 = vld [vmem:[#allocation2 + $0x60] sm:$0xff]
    %v181 = vld [vmem:[#allocation2 + $0x68] sm:$0xff]
    %v182 = vld [vmem:[#allocation2 + $0x70] sm:$0xff]
    %v183 = vld [vmem:[#allocation2 + $0x78] sm:$0xff]
    %v184 = vld [vmem:[#allocation2 + $0x80] sm:$0xff]
    %v185 = vld [vmem:[#allocation2 + $0x88] sm:$0xff]
    %v186 = vld [vmem:[#allocation2 + $0x90] sm:$0xff]
    %v187 = vld [vmem:[#allocation2 + $0x98] sm:$0xff]
    %v188 = vld [vmem:[#allocation2 + $0xa0] sm:$0xff]
    %v189 = vld [vmem:[#allocation2 + $0xa8] sm:$0xff]
    %v190 = vld [vmem:[#allocation2 + $0xb0] sm:$0xff]
    %v191 = vld [vmem:[#allocation2 + $0xb8] sm:$0xff]
    %v192 = vld [vmem:[#allocation2 + $0xc0] sm:$0xff]
    %v193 = vld [vmem:[#allocation2 + $0xc8] sm:$0xff]
    %v194 = vld [vmem:[#allocation2 + $0xd0] sm:$0xff]
    %v195 = vld [vmem:[#allocation2 + $0xd8] sm:$0xff]
    %v196 = vld [vmem:[#allocation2 + $0xe0] sm:$0xff]
    %v197 = vld [vmem:[#allocation2 + $0xe8] sm:$0xff]
    %v198 = vld [vmem:[#allocation2 + $0xf0] sm:$0xff]
    %v199 = vld [vmem:[#allocation2 + $0xf8] sm:$0xff]
    %v200 = vld [vmem:[#allocation5] sm:$0xff]
    %v201 = vld [vmem:[#allocation5 + $0x8] sm:$0xff]
    %v202 = vld [vmem:[#allocation5 + $0x10] sm:$0xff]
    %v203 = vld [vmem:[#allocation5 + $0x18] sm:$0xf]
    %v204 = vld [vmem:[#allocation5 + $0x1c] sm:$0xff]
    %v205 = vld [vmem:[#allocation5 + $0x24] sm:$0xff]
    %v206 = vld [vmem:[#allocation5 + $0x2c] sm:$0xff]
    %v207 = vld [vmem:[#allocation5 + $0x34] sm:$0xf]
    %v208 = vld [vmem:[#allocation5 + $0x38] sm:$0xff]
    %v209 = vld [vmem:[#allocation5 + $0x40] sm:$0xff]
    %v210 = vld [vmem:[#allocation5 + $0x48] sm:$0xff]
    %v211 = vld [vmem:[#allocation5 + $0x50] sm:$0xf]
    %v212 = vld [vmem:[#allocation5 + $0x54] sm:$0xff]
    %v213 = vld [vmem:[#allocation5 + $0x5c] sm:$0xff]
    %v214 = vld [vmem:[#allocation5 + $0x64] sm:$0xff]
    %v215 = vld [vmem:[#allocation5 + $0x6c] sm:$0xf]
    %v216 = vld [vmem:[#allocation5 + $0x70] sm:$0xff]
    %v217 = vld [vmem:[#allocation5 + $0x78] sm:$0xff]
    %v218 = vld [vmem:[#allocation5 + $0x80] sm:$0xff]
    %v219 = vld [vmem:[#allocation5 + $0x88] sm:$0xf]
    %v220 = vld [vmem:[#allocation5 + $0x8c] sm:$0xff]
    %v221 = vld [vmem:[#allocation5 + $0x94] sm:$0xff]
    %v222 = vld [vmem:[#allocation5 + $0x9c] sm:$0xff]
    %v223 = vld [vmem:[#allocation5 + $0xa4] sm:$0xf]
    %v224 = vld [vmem:[#allocation5 + $0xa8] sm:$0xff]
    %v225 = vld [vmem:[#allocation5 + $0xb0] sm:$0xff]
    %v226 = vld [vmem:[#allocation5 + $0xb8] sm:$0xff]
    %v227 = vld [vmem:[#allocation5 + $0xc0] sm:$0xf]
    %v228 = vld [vmem:[#allocation5 + $0xc4] sm:$0xff]
    %v229 = vld [vmem:[#allocation5 + $0xcc] sm:$0xff]
    %v230 = vld [vmem:[#allocation5 + $0xd4] sm:$0xff]
    %v231 = vld [vmem:[#allocation5 + $0xdc] sm:$0xf]
    %v232 = vld [vmem:[#allocation5 + $0xe0] sm:$0xff]
    %v233 = vld [vmem:[#allocation5 + $0xe8] sm:$0xff]
    %v234 = vld [vmem:[#allocation5 + $0xf0] sm:$0xff]
    %v235 = vld [vmem:[#allocation5 + $0xf8] sm:$0xf]
    %v236 = vld [vmem:[#allocation5 + $0xfc] sm:$0xff]
    %v237 = vld [vmem:[#allocation5 + $0x104] sm:$0xff]
    %v238 = vld [vmem:[#allocation5 + $0x10c] sm:$0xff]
    %v239 = vld [vmem:[#allocation5 + $0x114] sm:$0xf]
    %v240 = vld [vmem:[#allocation5 + $0x118] sm:$0xff]
    %v241 = vld [vmem:[#allocation5 + $0x120] sm:$0xff]
    %v242 = vld [vmem:[#allocation5 + $0x128] sm:$0xff]
    %v243 = vld [vmem:[#allocation5 + $0x130] sm:$0xf]
    %v244 = vld [vmem:[#allocation5 + $0x134] sm:$0xff]
    %v245 = vld [vmem:[#allocation5 + $0x13c] sm:$0xff]
    %v246 = vld [vmem:[#allocation5 + $0x144] sm:$0xff]
    %v247 = vld [vmem:[#allocation5 + $0x14c] sm:$0xf]
    %v248 = vld [vmem:[#allocation5 + $0x150] sm:$0xff]
    %v249 = vld [vmem:[#allocation5 + $0x158] sm:$0xff]
    %v250 = vld [vmem:[#allocation5 + $0x160] sm:$0xff]
    %v251 = vld [vmem:[#allocation5 + $0x168] sm:$0xf]
    %v252 = vld [vmem:[#allocation5 + $0x16c] sm:$0xff]
    %v253 = vld [vmem:[#allocation5 + $0x174] sm:$0xff]
    %v254 = vld [vmem:[#allocation5 + $0x17c] sm:$0xff]
    %v255 = vld [vmem:[#allocation5 + $0x184] sm:$0xf]
    %v256 = vld [vmem:[#allocation5 + $0x188] sm:$0xff]
    %v257 = vld [vmem:[#allocation5 + $0x190] sm:$0xff]
    %v258 = vld [vmem:[#allocation5 + $0x198] sm:$0xff]
    %v259 = vld [vmem:[#allocation5 + $0x1a0] sm:$0xf]
    %v260 = vld [vmem:[#allocation5 + $0x1a4] sm:$0xff]
    %v261 = vld [vmem:[#allocation5 + $0x1ac] sm:$0xff]
    %v262 = vld [vmem:[#allocation5 + $0x1b4] sm:$0xff]
    %v263 = vld [vmem:[#allocation5 + $0x1bc] sm:$0xf]
    %v264 = vld [vmem:[#allocation5 + $0x1c0] sm:$0xff]
    %v265 = vld [vmem:[#allocation5 + $0x1c8] sm:$0xff]
    %v266 = vld [vmem:[#allocation5 + $0x1d0] sm:$0xff]
    %v267 = vld [vmem:[#allocation5 + $0x1d8] sm:$0xf]
    %v268 = vld [vmem:[#allocation5 + $0x1dc] sm:$0xff]
    %v269 = vld [vmem:[#allocation5 + $0x1e4] sm:$0xff]
    %v270 = vld [vmem:[#allocation5 + $0x1ec] sm:$0xff]
    %v271 = vld [vmem:[#allocation5 + $0x1f4] sm:$0xf]
    %v272 = vld [vmem:[#allocation5 + $0x1f8] sm:$0xff]
    %v273 = vld [vmem:[#allocation5 + $0x200] sm:$0xff]
    %v274 = vld [vmem:[#allocation5 + $0x208] sm:$0xff]
    %v275 = vld [vmem:[#allocation5 + $0x210] sm:$0xf]
    %v276 = vld [vmem:[#allocation5 + $0x214] sm:$0xff]
    %v277 = vld [vmem:[#allocation5 + $0x21c] sm:$0xff]
    %v278 = vld [vmem:[#allocation5 + $0x224] sm:$0xff]
    %v279 = vld [vmem:[#allocation5 + $0x22c] sm:$0xf]
    %v280 = vld [vmem:[#allocation5 + $0x230] sm:$0xff]
    %v281 = vld [vmem:[#allocation5 + $0x238] sm:$0xff]
    %v282 = vld [vmem:[#allocation5 + $0x240] sm:$0xff]
    %v283 = vld [vmem:[#allocation5 + $0x248] sm:$0xf]
    %v284 = vld [vmem:[#allocation5 + $0x24c] sm:$0xff]
    %v285 = vld [vmem:[#allocation5 + $0x254] sm:$0xff]
    %v286 = vld [vmem:[#allocation5 + $0x25c] sm:$0xff]
    %v287 = vld [vmem:[#allocation5 + $0x264] sm:$0xf]
    %v288 = vld [vmem:[#allocation5 + $0x268] sm:$0xff]
    %v289 = vld [vmem:[#allocation5 + $0x270] sm:$0xff]
    %v290 = vld [vmem:[#allocation5 + $0x278] sm:$0xff]
    %v291 = vld [vmem:[#allocation5 + $0x280] sm:$0xf]
    %v292 = vld [vmem:[#allocation5 + $0x284] sm:$0xff]
    %v293 = vld [vmem:[#allocation5 + $0x28c] sm:$0xff]
    %v294 = vld [vmem:[#allocation5 + $0x294] sm:$0xff]
    %v295 = vld [vmem:[#allocation5 + $0x29c] sm:$0xf]
    %v296 = vld [vmem:[#allocation5 + $0x2a0] sm:$0xff]
    %v297 = vld [vmem:[#allocation5 + $0x2a8] sm:$0xff]
    %v298 = vld [vmem:[#allocation5 + $0x2b0] sm:$0xff]
    %v299 = vld [vmem:[#allocation5 + $0x2b8] sm:$0xf]
    %v300 = vld [vmem:[#allocation5 + $0x2bc] sm:$0xff]
    %v301 = vld [vmem:[#allocation5 + $0x2c4] sm:$0xff]
    %v302 = vld [vmem:[#allocation5 + $0x2cc] sm:$0xff]
    %v303 = vld [vmem:[#allocation5 + $0x2d4] sm:$0xf]
    %v304 = vld [vmem:[#allocation5 + $0x2d8] sm:$0xff]
    %v305 = vld [vmem:[#allocation5 + $0x2e0] sm:$0xff]
    %v306 = vld [vmem:[#allocation5 + $0x2e8] sm:$0xff]
    %v307 = vld [vmem:[#allocation5 + $0x2f0] sm:$0xf]
    %v308 = vld [vmem:[#allocation5 + $0x2f4] sm:$0xff]
    %v309 = vld [vmem:[#allocation5 + $0x2fc] sm:$0xff]
    %v310 = vld [vmem:[#allocation5 + $0x304] sm:$0xff]
    %v311 = vld [vmem:[#allocation5 + $0x30c] sm:$0xf]
    %v312 = vld [vmem:[#allocation5 + $0x310] sm:$0xff]
    %v313 = vld [vmem:[#allocation5 + $0x318] sm:$0xff]
    %v314 = vld [vmem:[#allocation5 + $0x320] sm:$0xff]
    %v315 = vld [vmem:[#allocation5 + $0x328] sm:$0xf]
    %v316 = vld [vmem:[#allocation5 + $0x32c] sm:$0xff]
    %v317 = vld [vmem:[#allocation5 + $0x334] sm:$0xff]
    %v318 = vld [vmem:[#allocation5 + $0x33c] sm:$0xff]
    %v319 = vld [vmem:[#allocation5 + $0x344] sm:$0xf]
    %v320 = vld [vmem:[#allocation5 + $0x348] sm:$0xff]
    %v321 = vld [vmem:[#allocation5 + $0x350] sm:$0xff]
    %v322 = vld [vmem:[#allocation5 + $0x358] sm:$0xff]
    %v323 = vld [vmem:[#allocation5 + $0x360] sm:$0xf]
    %v324 = vld [vmem:[#allocation5 + $0x364] sm:$0xff]
    %v325 = vld [vmem:[#allocation5 + $0x36c] sm:$0xff]
    %v326 = vld [vmem:[#allocation5 + $0x374] sm:$0xff]
    %v327 = vld [vmem:[#allocation5 + $0x37c] sm:$0xf]
    %v328 = vld [vmem:[%s2] sm:$0x3]
    %v329 = vld [vmem:[%s4] sm:$0x3]
    %v330 = vld [vmem:[%s6] sm:$0xff]
    %v331 = vld [vmem:[%s0] sm:$0xff]
    %v332 = vld [vmem:[%s0 + $0x8] sm:$0xff]
    %v333 = vld [vmem:[%s0 + $0x10] sm:$0xff]
    %v334 = vld [vmem:[%s0 + $0x18] sm:$0xff]
    %v335 = vld [vmem:[%s0 + $0x20] sm:$0xff]
    %v336 = vld [vmem:[%s0 + $0x28] sm:$0xff]
    %v337 = vld [vmem:[%s0 + $0x30] sm:$0xff]
    %v338 = vld [vmem:[%s0 + $0x38] sm:$0xff]
    %v339 = vld [vmem:[%s0 + $0x40] sm:$0xff]
    %v340 = vld [vmem:[%s0 + $0x48] sm:$0xff]
    %v341 = vld [vmem:[%s0 + $0x50] sm:$0xff]
    %v342 = vld [vmem:[%s0 + $0x58] sm:$0xff]
    %v343 = vld [vmem:[%s0 + $0x60] sm:$0xff]
    %v344 = vld [vmem:[%s0 + $0x68] sm:$0xff]
    %v345 = vld [vmem:[%s0 + $0x70] sm:$0xff]
    %v346 = vld [vmem:[%s0 + $0x78] sm:$0xff]
    %v347 = vld [vmem:[%s0 + $0x80] sm:$0xff]
    %v348 = vld [vmem:[%s0 + $0x88] sm:$0xff]
    %v349 = vld [vmem:[%s0 + $0x90] sm:$0xff]
    %v350 = vld [vmem:[%s0 + $0x98] sm:$0xff]
    %v351 = vld [vmem:[%s0 + $0xa0] sm:$0xff]
    %v352 = vld [vmem:[%s0 + $0xa8] sm:$0xff]
    %v353 = vld [vmem:[%s0 + $0xb0] sm:$0xff]
    %v354 = vld [vmem:[%s0 + $0xb8] sm:$0xff]
    %v355 = vld [vmem:[%s0 + $0xc0] sm:$0xff]
    %v356 = vld [vmem:[%s0 + $0xc8] sm:$0xff]
    %v357 = vld [vmem:[%s0 + $0xd0] sm:$0xff]
    %v358 = vld [vmem:[%s0 + $0xd8] sm:$0xff]
    %v359 = vpack.c.bf16 %v338, %v331
    %v360 = vpack.c.bf16 %v339, %v332
    %v361 = vpack.c.bf16 %v340, %v333
    %v362 = vpack.c.bf16 %v341, %v334
    %v363 = vpack.c.bf16 %v342, %v335
    %v364 = vpack.c.bf16 %v343, %v336
    %v365 = vpack.c.bf16 %v344, %v337
    %v366 = vpack.c.bf16 %v352, %v345
    %v367 = vpack.c.bf16 %v353, %v346
    %v368 = vpack.c.bf16 %v354, %v347
    %v369 = vpack.c.bf16 %v355, %v348
    %v370 = vpack.c.bf16 %v356, %v349
    %v371 = vpack.c.bf16 %v357, %v350
    %v372 = vpack.c.bf16 %v358, %v351
    %v374 = vlaneseq
    %v375 = vshrl.u32 %v374, 7
    %v376 = vsub.s32 0, %v375
    %v377 = vrot.slane %v328, %v376
    %v378 = vlaneseq
    %v379 = vshrl.u32 %v378, 7
    %v380 = vsub.s32 1, %v379
    %v381 = vrot.slane %v328, %v380
    %v496 = vunpack.c.l.b16 %v56
    %v497 = vunpack.c.h.b16 %v56
    %v498 = vunpack.c.l.b16 %v57
    %v499 = vunpack.c.h.b16 %v57
    %v500 = vunpack.c.l.b16 %v58
    %v501 = vunpack.c.h.b16 %v58
    %v502 = vunpack.c.l.b16 %v59
    %v503 = vunpack.c.h.b16 %v59
    %v504 = vunpack.c.l.b16 %v60
    %v505 = vunpack.c.h.b16 %v60
    %v506 = vunpack.c.l.b16 %v61
    %v507 = vunpack.c.h.b16 %v61
    %v508 = vunpack.c.l.b16 %v62
    %v509 = vunpack.c.h.b16 %v62
    %v510 = vunpack.c.l.b16 %v63
    %v511 = vunpack.c.h.b16 %v63
    %v512 = vunpack.c.l.b16 %v64
    %v513 = vunpack.c.h.b16 %v64
    %v514 = vunpack.c.l.b16 %v65
    %v515 = vunpack.c.h.b16 %v65
    %v516 = vunpack.c.l.b16 %v66
    %v517 = vunpack.c.h.b16 %v66
    %v518 = vunpack.c.l.b16 %v67
    %v519 = vunpack.c.h.b16 %v67
    %v520 = vunpack.c.l.b16 %v68
    %v521 = vunpack.c.h.b16 %v68
    %v522 = vunpack.c.l.b16 %v69
    %v523 = vunpack.c.h.b16 %v69
    %v524 = vunpack.c.l.b16 %v70
    %v525 = vunpack.c.h.b16 %v70
    %v526 = vunpack.c.l.b16 %v71
    %v527 = vunpack.c.h.b16 %v71
    %v528 = vunpack.c.l.b16 %v72
    %v529 = vunpack.c.h.b16 %v72
    %v530 = vunpack.c.l.b16 %v73
    %v531 = vunpack.c.h.b16 %v73
    %v532 = vunpack.c.l.b16 %v74
    %v533 = vunpack.c.h.b16 %v74
    %v534 = vunpack.c.l.b16 %v75
    %v535 = vunpack.c.h.b16 %v75
    %v536 = vunpack.c.l.b16 %v76
    %v537 = vunpack.c.h.b16 %v76
    %v538 = vunpack.c.l.b16 %v77
    %v539 = vunpack.c.h.b16 %v77
    %v540 = vunpack.c.l.b16 %v78
    %v541 = vunpack.c.h.b16 %v78
    %v542 = vunpack.c.l.b16 %v79
    %v543 = vunpack.c.h.b16 %v79
    %v544 = vunpack.c.l.b16 %v80
    %v545 = vunpack.c.h.b16 %v80
    %v546 = vunpack.c.l.b16 %v81
    %v547 = vunpack.c.h.b16 %v81
    %v548 = vunpack.c.l.b16 %v82
    %v549 = vunpack.c.h.b16 %v82
    %v550 = vunpack.c.l.b16 %v83
    %v551 = vunpack.c.h.b16 %v83
    %v552 = vunpack.c.l.b16 %v84
    %v553 = vunpack.c.h.b16 %v84
    %v554 = vunpack.c.l.b16 %v85
    %v555 = vunpack.c.h.b16 %v85
    %v556 = vunpack.c.l.b16 %v86
    %v557 = vunpack.c.h.b16 %v86
    %v558 = vunpack.c.l.b16 %v87
    %v559 = vunpack.c.h.b16 %v87
    %v560 = vunpack.c.l.b16 %v88
    %v561 = vunpack.c.h.b16 %v88
    %v562 = vunpack.c.l.b16 %v89
    %v563 = vunpack.c.h.b16 %v89
    %v564 = vunpack.c.l.b16 %v90
    %v565 = vunpack.c.h.b16 %v90
    %v566 = vunpack.c.l.b16 %v91
    %v567 = vunpack.c.h.b16 %v91
    %v568 = vunpack.c.l.b16 %v92
    %v569 = vunpack.c.h.b16 %v92
    %v570 = vunpack.c.l.b16 %v93
    %v571 = vunpack.c.h.b16 %v93
    %v572 = vunpack.c.l.b16 %v94
    %v573 = vunpack.c.h.b16 %v94
    %v574 = vunpack.c.l.b16 %v95
    %v575 = vunpack.c.h.b16 %v95
    %v576 = vunpack.c.l.b16 %v96
    %v577 = vunpack.c.h.b16 %v96
    %v578 = vunpack.c.l.b16 %v97
    %v579 = vunpack.c.h.b16 %v97
    %v580 = vunpack.c.l.b16 %v98
    %v581 = vunpack.c.h.b16 %v98
    %v582 = vunpack.c.l.b16 %v99
    %v583 = vunpack.c.h.b16 %v99
    %v584 = vunpack.c.l.b16 %v100
    %v585 = vunpack.c.h.b16 %v100
    %v586 = vunpack.c.l.b16 %v101
    %v587 = vunpack.c.h.b16 %v101
    %v588 = vunpack.c.l.b16 %v102
    %v589 = vunpack.c.h.b16 %v102
    %v590 = vunpack.c.l.b16 %v103
    %v591 = vunpack.c.h.b16 %v103
    %v592 = vunpack.c.l.b16 %v104
    %v593 = vunpack.c.h.b16 %v104
    %v594 = vunpack.c.l.b16 %v105
    %v595 = vunpack.c.h.b16 %v105
    %v596 = vunpack.c.l.b16 %v106
    %v597 = vunpack.c.h.b16 %v106
    %v598 = vunpack.c.l.b16 %v107
    %v599 = vunpack.c.h.b16 %v107
    %v600 = vunpack.c.l.b16 %v108
    %v601 = vunpack.c.h.b16 %v108
    %v602 = vunpack.c.l.b16 %v109
    %v603 = vunpack.c.h.b16 %v109
    %v604 = vunpack.c.l.b16 %v110
    %v605 = vunpack.c.h.b16 %v110
    %v606 = vunpack.c.l.b16 %v111
    %v607 = vunpack.c.h.b16 %v111
    %v608 = vunpack.c.l.b16 %v112
    %v609 = vunpack.c.h.b16 %v112
    %v610 = vunpack.c.l.b16 %v113
    %v611 = vunpack.c.h.b16 %v113
    %v612 = vunpack.c.l.b16 %v114
    %v613 = vunpack.c.h.b16 %v114
    %v614 = vunpack.c.l.b16 %v115
    %v615 = vunpack.c.h.b16 %v115
    %v616 = vunpack.c.l.b16 %v116
    %v617 = vunpack.c.h.b16 %v116
    %v618 = vunpack.c.l.b16 %v117
    %v619 = vunpack.c.h.b16 %v117
    %v620 = vunpack.c.l.b16 %v118
    %v621 = vunpack.c.h.b16 %v118
    %v622 = vunpack.c.l.b16 %v119
    %v623 = vunpack.c.h.b16 %v119
    %v624 = vunpack.c.l.b16 %v120
    %v625 = vunpack.c.h.b16 %v120
    %v626 = vunpack.c.l.b16 %v121
    %v627 = vunpack.c.h.b16 %v121
    %v628 = vunpack.c.l.b16 %v122
    %v629 = vunpack.c.h.b16 %v122
    %v630 = vunpack.c.l.b16 %v123
    %v631 = vunpack.c.h.b16 %v123
    %v632 = vunpack.c.l.b16 %v124
    %v633 = vunpack.c.h.b16 %v124
    %v634 = vunpack.c.l.b16 %v125
    %v635 = vunpack.c.h.b16 %v125
    %v636 = vunpack.c.l.b16 %v126
    %v637 = vunpack.c.h.b16 %v126
    %v638 = vunpack.c.l.b16 %v127
    %v639 = vunpack.c.h.b16 %v127
    %v640 = vunpack.c.l.b16 %v128
    %v641 = vunpack.c.h.b16 %v128
    %v642 = vunpack.c.l.b16 %v129
    %v643 = vunpack.c.h.b16 %v129
    %v644 = vunpack.c.l.b16 %v130
    %v645 = vunpack.c.h.b16 %v130
    %v646 = vunpack.c.l.b16 %v131
    %v647 = vunpack.c.h.b16 %v131
    %v648 = vunpack.c.l.b16 %v132
    %v649 = vunpack.c.h.b16 %v132
    %v650 = vunpack.c.l.b16 %v133
    %v651 = vunpack.c.h.b16 %v133
    %v652 = vunpack.c.l.b16 %v134
    %v653 = vunpack.c.h.b16 %v134
    %v654 = vunpack.c.l.b16 %v135
    %v655 = vunpack.c.h.b16 %v135
    %v656 = vunpack.c.l.b16 %v136
    %v657 = vunpack.c.h.b16 %v136
    %v658 = vunpack.c.l.b16 %v137
    %v659 = vunpack.c.h.b16 %v137
    %v660 = vunpack.c.l.b16 %v138
    %v661 = vunpack.c.h.b16 %v138
    %v662 = vunpack.c.l.b16 %v139
    %v663 = vunpack.c.h.b16 %v139
    %v664 = vunpack.c.l.b16 %v140
    %v665 = vunpack.c.h.b16 %v140
    %v666 = vunpack.c.l.b16 %v141
    %v667 = vunpack.c.h.b16 %v141
    %v668 = vunpack.c.l.b16 %v142
    %v669 = vunpack.c.h.b16 %v142
    %v670 = vunpack.c.l.b16 %v143
    %v671 = vunpack.c.h.b16 %v143
    %v672 = vunpack.c.l.b16 %v144
    %v673 = vunpack.c.h.b16 %v144
    %v674 = vunpack.c.l.b16 %v145
    %v675 = vunpack.c.h.b16 %v145
    %v676 = vunpack.c.l.b16 %v146
    %v677 = vunpack.c.h.b16 %v146
    %v678 = vunpack.c.l.b16 %v147
    %v679 = vunpack.c.h.b16 %v147
    %v680 = vunpack.c.l.b16 %v148
    %v681 = vunpack.c.h.b16 %v148
    %v682 = vunpack.c.l.b16 %v149
    %v683 = vunpack.c.h.b16 %v149
    %v684 = vunpack.c.l.b16 %v150
    %v685 = vunpack.c.h.b16 %v150
    %v686 = vunpack.c.l.b16 %v151
    %v687 = vunpack.c.h.b16 %v151
    %v688 = vunpack.c.l.b16 %v152
    %v689 = vunpack.c.h.b16 %v152
    %v690 = vunpack.c.l.b16 %v153
    %v691 = vunpack.c.h.b16 %v153
    %v692 = vunpack.c.l.b16 %v154
    %v693 = vunpack.c.h.b16 %v154
    %v694 = vunpack.c.l.b16 %v155
    %v695 = vunpack.c.h.b16 %v155
    %v696 = vunpack.c.l.b16 %v156
    %v697 = vunpack.c.h.b16 %v156
    %v698 = vunpack.c.l.b16 %v157
    %v699 = vunpack.c.h.b16 %v157
    %v700 = vunpack.c.l.b16 %v158
    %v701 = vunpack.c.h.b16 %v158
    %v702 = vunpack.c.l.b16 %v159
    %v703 = vunpack.c.h.b16 %v159
    %v704 = vunpack.c.l.b16 %v160
    %v705 = vunpack.c.h.b16 %v160
    %v706 = vunpack.c.l.b16 %v161
    %v707 = vunpack.c.h.b16 %v161
    %v708 = vunpack.c.l.b16 %v162
    %v709 = vunpack.c.h.b16 %v162
    %v710 = vunpack.c.l.b16 %v163
    %v711 = vunpack.c.h.b16 %v163
    %v712 = vunpack.c.l.b16 %v164
    %v713 = vunpack.c.h.b16 %v164
    %v714 = vunpack.c.l.b16 %v165
    %v715 = vunpack.c.h.b16 %v165
    %v716 = vunpack.c.l.b16 %v166
    %v717 = vunpack.c.h.b16 %v166
    %v718 = vunpack.c.l.b16 %v167
    %v719 = vunpack.c.h.b16 %v167
    %v720 = vpack.c.b16 %v498, %v496
    %v721 = vpack.c.b16 %v499, %v497
    %v722 = vpack.c.b16 %v502, %v500
    %v723 = vpack.c.b16 %v503, %v501
    %v724 = vpack.c.b16 %v506, %v504
    %v725 = vpack.c.b16 %v507, %v505
    %v726 = vpack.c.b16 %v510, %v508
    %v727 = vpack.c.b16 %v511, %v509
    %v728 = vpack.c.b16 %v514, %v512
    %v729 = vpack.c.b16 %v515, %v513
    %v730 = vpack.c.b16 %v518, %v516
    %v731 = vpack.c.b16 %v519, %v517
    %v732 = vpack.c.b16 %v522, %v520
    %v733 = vpack.c.b16 %v523, %v521
    %v734 = vpack.c.b16 %v526, %v524
    %v735 = vpack.c.b16 %v527, %v525
    %v736 = vpack.c.b16 %v530, %v528
    %v737 = vpack.c.b16 %v531, %v529
    %v738 = vpack.c.b16 %v534, %v532
    %v739 = vpack.c.b16 %v535, %v533
    %v740 = vpack.c.b16 %v538, %v536
    %v741 = vpack.c.b16 %v539, %v537
    %v742 = vpack.c.b16 %v542, %v540
    %v743 = vpack.c.b16 %v543, %v541
    %v744 = vpack.c.b16 %v546, %v544
    %v745 = vpack.c.b16 %v547, %v545
    %v746 = vpack.c.b16 %v550, %v548
    %v747 = vpack.c.b16 %v551, %v549
    %v748 = vpack.c.b16 %v554, %v552
    %v749 = vpack.c.b16 %v555, %v553
    %v750 = vpack.c.b16 %v558, %v556
    %v751 = vpack.c.b16 %v559, %v557
    %v752 = vpack.c.b16 %v562, %v560
    %v753 = vpack.c.b16 %v563, %v561
    %v754 = vpack.c.b16 %v566, %v564
    %v755 = vpack.c.b16 %v567, %v565
    %v756 = vpack.c.b16 %v570, %v568
    %v757 = vpack.c.b16 %v571, %v569
    %v758 = vpack.c.b16 %v574, %v572
    %v759 = vpack.c.b16 %v575, %v573
    %v760 = vpack.c.b16 %v578, %v576
    %v761 = vpack.c.b16 %v579, %v577
    %v762 = vpack.c.b16 %v582, %v580
    %v763 = vpack.c.b16 %v583, %v581
    %v764 = vpack.c.b16 %v586, %v584
    %v765 = vpack.c.b16 %v587, %v585
    %v766 = vpack.c.b16 %v590, %v588
    %v767 = vpack.c.b16 %v591, %v589
    %v768 = vpack.c.b16 %v594, %v592
    %v769 = vpack.c.b16 %v595, %v593
    %v770 = vpack.c.b16 %v598, %v596
    %v771 = vpack.c.b16 %v599, %v597
    %v772 = vpack.c.b16 %v602, %v600
    %v773 = vpack.c.b16 %v603, %v601
    %v774 = vpack.c.b16 %v606, %v604
    %v775 = vpack.c.b16 %v607, %v605
    %v776 = vpack.c.b16 %v610, %v608
    %v777 = vpack.c.b16 %v611, %v609
    %v778 = vpack.c.b16 %v614, %v612
    %v779 = vpack.c.b16 %v615, %v613
    %v780 = vpack.c.b16 %v618, %v616
    %v781 = vpack.c.b16 %v619, %v617
    %v782 = vpack.c.b16 %v622, %v620
    %v783 = vpack.c.b16 %v623, %v621
    %v784 = vpack.c.b16 %v626, %v624
    %v785 = vpack.c.b16 %v627, %v625
    %v786 = vpack.c.b16 %v630, %v628
    %v787 = vpack.c.b16 %v631, %v629
    %v788 = vpack.c.b16 %v634, %v632
    %v789 = vpack.c.b16 %v635, %v633
    %v790 = vpack.c.b16 %v638, %v636
    %v791 = vpack.c.b16 %v639, %v637
    %v792 = vpack.c.b16 %v642, %v640
    %v793 = vpack.c.b16 %v643, %v641
    %v794 = vpack.c.b16 %v646, %v644
    %v795 = vpack.c.b16 %v647, %v645
    %v796 = vpack.c.b16 %v650, %v648
    %v797 = vpack.c.b16 %v651, %v649
    %v798 = vpack.c.b16 %v654, %v652
    %v799 = vpack.c.b16 %v655, %v653
    %v800 = vpack.c.b16 %v658, %v656
    %v801 = vpack.c.b16 %v659, %v657
    %v802 = vpack.c.b16 %v662, %v660
    %v803 = vpack.c.b16 %v663, %v661
    %v804 = vpack.c.b16 %v666, %v664
    %v805 = vpack.c.b16 %v667, %v665
    %v806 = vpack.c.b16 %v670, %v668
    %v807 = vpack.c.b16 %v671, %v669
    %v808 = vpack.c.b16 %v674, %v672
    %v809 = vpack.c.b16 %v675, %v673
    %v810 = vpack.c.b16 %v678, %v676
    %v811 = vpack.c.b16 %v679, %v677
    %v812 = vpack.c.b16 %v682, %v680
    %v813 = vpack.c.b16 %v683, %v681
    %v814 = vpack.c.b16 %v686, %v684
    %v815 = vpack.c.b16 %v687, %v685
    %v816 = vpack.c.b16 %v690, %v688
    %v817 = vpack.c.b16 %v691, %v689
    %v818 = vpack.c.b16 %v694, %v692
    %v819 = vpack.c.b16 %v695, %v693
    %v820 = vpack.c.b16 %v698, %v696
    %v821 = vpack.c.b16 %v699, %v697
    %v822 = vpack.c.b16 %v702, %v700
    %v823 = vpack.c.b16 %v703, %v701
    %v824 = vpack.c.b16 %v706, %v704
    %v825 = vpack.c.b16 %v707, %v705
    %v826 = vpack.c.b16 %v710, %v708
    %v827 = vpack.c.b16 %v711, %v709
    %v828 = vpack.c.b16 %v714, %v712
    %v829 = vpack.c.b16 %v715, %v713
    %v830 = vpack.c.b16 %v718, %v716
    %v831 = vpack.c.b16 %v719, %v717
    %944 = vmatprep.subr.bf16.mxu0 %v721
    %945 = vmatpush1.bf16.msra.mxu0 %v720
    %946 = vmatprep.subr.bf16.mxu0 %v723
    %947 = vmatpush1.bf16.msra.mxu0 %v722
    %948 = vmatprep.subr.bf16.mxu0 %v725
    %949 = vmatpush1.bf16.msra.mxu0 %v724
    %950 = vmatprep.subr.bf16.mxu0 %v727
    %951 = vmatpush1.bf16.msra.mxu0 %v726
    %952 = vmatprep.subr.bf16.mxu0 %v729
    %953 = vmatpush1.bf16.msra.mxu0 %v728
    %954 = vmatprep.subr.bf16.mxu0 %v731
    %955 = vmatpush1.bf16.msra.mxu0 %v730
    %956 = vmatprep.subr.bf16.mxu0 %v733
    %957 = vmatpush1.bf16.msra.mxu0 %v732
    %958 = vmatprep.subr.bf16.mxu0 %v735
    %959 = vmatpush1.bf16.msra.mxu0 %v734
    %960 = vmatprep.subr.bf16.mxu0 %v737
    %961 = vmatpush1.bf16.msra.mxu0 %v736
    %962 = vmatprep.subr.bf16.mxu0 %v739
    %963 = vmatpush1.bf16.msra.mxu0 %v738
    %964 = vmatprep.subr.bf16.mxu0 %v741
    %965 = vmatpush1.bf16.msra.mxu0 %v740
    %966 = vmatprep.subr.bf16.mxu0 %v743
    %967 = vmatpush1.bf16.msra.mxu0 %v742
    %968 = vmatprep.subr.bf16.mxu0 %v745
    %969 = vmatpush1.bf16.msra.mxu0 %v744
    %970 = vmatprep.subr.bf16.mxu0 %v747
    %971 = vmatpush1.bf16.msra.mxu0 %v746
    %972 = vmatprep.subr.bf16.mxu0 %v749
    %973 = vmatpush1.bf16.msra.mxu0 %v748
    %974 = vmatprep.subr.bf16.mxu0 %v751
    %975 = vmatpush1.bf16.msra.mxu0 %v750
    %976 = vmatprep.mubr.bf16.mxu0 %v360
    %977 = vmatmul.mubr.bf16.gmra.mrb[0].mxu0 %v359
    %v978 = vpop.f32.mrb[0].mxu0
    %v979 = vadd.f32 %v377, %v978
    %v980 = vpop.f32.mrb[0].mxu0
    %v981 = vadd.f32 %v381, %v980
    %v982 = vpop.f32.mrb[0].mxu0
    %v983 = vadd.f32 %v377, %v982
    %v984 = vpop.f32.mrb[0].mxu0
    %v985 = vadd.f32 %v381, %v984
    %986 = vmatprep.mubr.bf16.mxu0 %v367
    %987 = vmatmul.mubr.bf16.gmra.mrb[0].mxu0 %v366
    %v988 = vpop.f32.mrb[0].mxu0
    %v989 = vadd.f32 %v377, %v988
    %v990 = vpop.f32.mrb[0].mxu0
    %v991 = vadd.f32 %v381, %v990
    %v992 = vpop.f32.mrb[0].mxu0
    %v993 = vadd.f32 %v377, %v992
    %v994 = vpop.f32.mrb[0].mxu0
    %v995 = vadd.f32 %v381, %v994
    %996 = vdwg.mxu0
    %997 = vmatprep.subr.bf16.mxu0 %v753
    %998 = vmatpush1.bf16.msra.mxu0 %v752
    %999 = vmatprep.subr.bf16.mxu0 %v755
    %1000 = vmatpush1.bf16.msra.mxu0 %v754
    %1001 = vmatprep.subr.bf16.mxu0 %v757
    %1002 = vmatpush1.bf16.msra.mxu0 %v756
    %1003 = vmatprep.subr.bf16.mxu0 %v759
    %1004 = vmatpush1.bf16.msra.mxu0 %v758
    %1005 = vmatprep.subr.bf16.mxu0 %v761
    %1006 = vmatpush1.bf16.msra.mxu0 %v760
    %1007 = vmatprep.subr.bf16.mxu0 %v763
    %1008 = vmatpush1.bf16.msra.mxu0 %v762
    %1009 = vmatprep.subr.bf16.mxu0 %v765
    %1010 = vmatpush1.bf16.msra.mxu0 %v764
    %1011 = vmatprep.subr.bf16.mxu0 %v767
    %1012 = vmatpush1.bf16.msra.mxu0 %v766
    %1013 = vmatprep.subr.bf16.mxu0 %v769
    %1014 = vmatpush1.bf16.msra.mxu0 %v768
    %1015 = vmatprep.subr.bf16.mxu0 %v771
    %1016 = vmatpush1.bf16.msra.mxu0 %v770
    %1017 = vmatprep.subr.bf16.mxu0 %v773
    %1018 = vmatpush1.bf16.msra.mxu0 %v772
    %1019 = vmatprep.subr.bf16.mxu0 %v775
    %1020 = vmatpush1.bf16.msra.mxu0 %v774
    %1021 = vmatprep.subr.bf16.mxu0 %v777
    %1022 = vmatpush1.bf16.msra.mxu0 %v776
    %1023 = vmatprep.subr.bf16.mxu0 %v779
    %1024 = vmatpush1.bf16.msra.mxu0 %v778
    %1025 = vmatprep.subr.bf16.mxu0 %v781
    %1026 = vmatpush1.bf16.msra.mxu0 %v780
    %1027 = vmatprep.subr.bf16.mxu0 %v783
    %1028 = vmatpush1.bf16.msra.mxu0 %v782
    %1029 = vmatprep.mubr.bf16.mxu0 %v362
    %1030 = vmatmul.mubr.bf16.gmra.mrb[0].mxu0 %v361
    %v1031 = vpop.f32.mrb[0].mxu0
    %v1032 = vadd.f32 %v979, %v1031
    %v1033 = vpop.f32.mrb[0].mxu0
    %v1034 = vadd.f32 %v981, %v1033
    %v1035 = vpop.f32.mrb[0].mxu0
    %v1036 = vadd.f32 %v983, %v1035
    %v1037 = vpop.f32.mrb[0].mxu0
    %v1038 = vadd.f32 %v985, %v1037
    %1039 = vmatprep.mubr.bf16.mxu0 %v369
    %1040 = vmatmul.mubr.bf16.gmra.mrb[0].mxu0 %v368
    %v1041 = vpop.f32.mrb[0].mxu0
    %v1042 = vadd.f32 %v989, %v1041
    %v1043 = vpop.f32.mrb[0].mxu0
    %v1044 = vadd.f32 %v991, %v1043
    %v1045 = vpop.f32.mrb[0].mxu0
    %v1046 = vadd.f32 %v993, %v1045
    %v1047 = vpop.f32.mrb[0].mxu0
    %v1048 = vadd.f32 %v995, %v1047
    %1049 = vdwg.mxu0
    %1050 = vmatprep.subr.bf16.mxu0 %v785
    %1051 = vmatpush1.bf16.msra.mxu0 %v784
    %1052 = vmatprep.subr.bf16.mxu0 %v787
    %1053 = vmatpush1.bf16.msra.mxu0 %v786
    %1054 = vmatprep.subr.bf16.mxu0 %v789
    %1055 = vmatpush1.bf16.msra.mxu0 %v788
    %1056 = vmatprep.subr.bf16.mxu0 %v791
    %1057 = vmatpush1.bf16.msra.mxu0 %v790
    %1058 = vmatprep.subr.bf16.mxu0 %v793
    %1059 = vmatpush1.bf16.msra.mxu0 %v792
    %1060 = vmatprep.subr.bf16.mxu0 %v795
    %1061 = vmatpush1.bf16.msra.mxu0 %v794
    %1062 = vmatprep.subr.bf16.mxu0 %v797
    %1063 = vmatpush1.bf16.msra.mxu0 %v796
    %1064 = vmatprep.subr.bf16.mxu0 %v799
    %1065 = vmatpush1.bf16.msra.mxu0 %v798
    %1066 = vmatprep.subr.bf16.mxu0 %v801
    %1067 = vmatpush1.bf16.msra.mxu0 %v800
    %1068 = vmatprep.subr.bf16.mxu0 %v803
    %1069 = vmatpush1.bf16.msra.mxu0 %v802
    %1070 = vmatprep.subr.bf16.mxu0 %v805
    %1071 = vmatpush1.bf16.msra.mxu0 %v804
    %1072 = vmatprep.subr.bf16.mxu0 %v807
    %1073 = vmatpush1.bf16.msra.mxu0 %v806
    %1074 = vmatprep.subr.bf16.mxu0 %v809
    %1075 = vmatpush1.bf16.msra.mxu0 %v808
    %1076 = vmatprep.subr.bf16.mxu0 %v811
    %1077 = vmatpush1.bf16.msra.mxu0 %v810
    %1078 = vmatprep.subr.bf16.mxu0 %v813
    %1079 = vmatpush1.bf16.msra.mxu0 %v812
    %1080 = vmatprep.subr.bf16.mxu0 %v815
    %1081 = vmatpush1.bf16.msra.mxu0 %v814
    %1082 = vmatprep.mubr.bf16.mxu0 %v364
    %1083 = vmatmul.mubr.bf16.gmra.mrb[0].mxu0 %v363
    %v1084 = vpop.f32.mrb[0].mxu0
    %v1085 = vadd.f32 %v1032, %v1084
    %v1086 = vpop.f32.mrb[0].mxu0
    %v1087 = vadd.f32 %v1034, %v1086
    %v1088 = vpop.f32.mrb[0].mxu0
    %v1089 = vadd.f32 %v1036, %v1088
    %v1090 = vpop.f32.mrb[0].mxu0
    %v1091 = vadd.f32 %v1038, %v1090
    %1092 = vmatprep.mubr.bf16.mxu0 %v371
    %1093 = vmatmul.mubr.bf16.gmra.mrb[0].mxu0 %v370
    %v1094 = vpop.f32.mrb[0].mxu0
    %v1095 = vadd.f32 %v1042, %v1094
    %v1096 = vpop.f32.mrb[0].mxu0
    %v1097 = vadd.f32 %v1044, %v1096
    %v1098 = vpop.f32.mrb[0].mxu0
    %v1099 = vadd.f32 %v1046, %v1098
    %v1100 = vpop.f32.mrb[0].mxu0
    %v1101 = vadd.f32 %v1048, %v1100
    %1102 = vdwg.mxu0
    %1103 = vmatprep.subr.bf16.mxu0 %v817
    %1104 = vmatpush1.bf16.msra.mxu0 %v816
    %1105 = vmatprep.subr.bf16.mxu0 %v819
    %1106 = vmatpush1.bf16.msra.mxu0 %v818
    %1107 = vmatprep.subr.bf16.mxu0 %v821
    %1108 = vmatpush1.bf16.msra.mxu0 %v820
    %1109 = vmatprep.subr.bf16.mxu0 %v823
    %1110 = vmatpush1.bf16.msra.mxu0 %v822
    %1111 = vmatprep.subr.bf16.mxu0 %v825
    %1112 = vmatpush1.bf16.msra.mxu0 %v824
    %1113 = vmatprep.subr.bf16.mxu0 %v827
    %1114 = vmatpush1.bf16.msra.mxu0 %v826
    %1115 = vmatprep.subr.bf16.mxu0 %v829
    %1116 = vmatpush1.bf16.msra.mxu0 %v828
    %1117 = vmatprep.subr.bf16.mxu0 %v831
    %1118 = vmatpush1.bf16.msra.mxu0 %v830
    %1119 = vmatprep.subr.bf16.mxu0 0
    %1120 = vmatpush1.bf16.msra.mxu0 0
    %1121 = vmatprep.subr.bf16.mxu0 0
    %1122 = vmatpush1.bf16.msra.mxu0 0
    %1123 = vmatprep.subr.bf16.mxu0 0
    %1124 = vmatpush1.bf16.msra.mxu0 0
    %1125 = vmatprep.subr.bf16.mxu0 0
    %1126 = vmatpush1.bf16.msra.mxu0 0
    %1127 = vmatprep.subr.bf16.mxu0 0
    %1128 = vmatpush1.bf16.msra.mxu0 0
    %1129 = vmatprep.subr.bf16.mxu0 0
    %1130 = vmatpush1.bf16.msra.mxu0 0
    %1131 = vmatprep.subr.bf16.mxu0 0
    %1132 = vmatpush1.bf16.msra.mxu0 0
    %1133 = vmatprep.subr.bf16.mxu0 0
    %1134 = vmatpush1.bf16.msra.mxu0 0
    %1135 = vmatprep.mubr.bf16.mxu0 0
    %1136 = vmatmul.mubr.bf16.gmra.mrb[0].mxu0 %v365
    %v1137 = vpop.f32.mrb[0].mxu0
    %v1138 = vadd.f32 %v1085, %v1137
    %v1139 = vpop.f32.mrb[0].mxu0
    %v1140 = vadd.f32 %v1087, %v1139
    %v1141 = vpop.f32.mrb[0].mxu0
    %v1142 = vadd.f32 %v1089, %v1141
    %v1143 = vpop.f32.mrb[0].mxu0
    %v1144 = vadd.f32 %v1091, %v1143
    %1145 = vmatprep.mubr.bf16.mxu0 0
    %1146 = vmatmul.mubr.bf16.gmra.mrb[0].mxu0 %v372
    %v1147 = vpop.f32.mrb[0].mxu0
    %v1148 = vadd.f32 %v1095, %v1147
    %v1149 = vpop.f32.mrb[0].mxu0
    %v1150 = vadd.f32 %v1097, %v1149
    %v1151 = vpop.f32.mrb[0].mxu0
    %v1152 = vadd.f32 %v1099, %v1151
    %v1153 = vpop.f32.mrb[0].mxu0
    %v1154 = vadd.f32 %v1101, %v1153
    %1155 = vdwg.mxu0
    %v1156 = vmax.f32 %v1138, 0.0
    %v1157 = vmax.f32 %v1140, 0.0
    %v1158 = vmax.f32 %v1142, 0.0
    %v1159 = vmax.f32 %v1144, 0.0
    %v1160 = vmax.f32 %v1148, 0.0
    %v1161 = vmax.f32 %v1150, 0.0
    %v1162 = vmax.f32 %v1152, 0.0
    %v1163 = vmax.f32 %v1154, 0.0
    %v1164 = vpack.c.bf16 %v1158, %v1156
    %v1165 = vpack.c.bf16 %v1159, %v1157
    %v1166 = vpack.c.bf16 %v1162, %v1160
    %v1167 = vpack.c.bf16 %v1163, %v1161
    %v1169 = vlaneseq
    %v1170 = vshrl.u32 %v1169, 7
    %v1171 = vsub.s32 0, %v1170
    %v1172 = vrot.slane %v329, %v1171
    %v1173 = vlaneseq
    %v1174 = vshrl.u32 %v1173, 7
    %v1175 = vsub.s32 1, %v1174
    %v1176 = vrot.slane %v329, %v1175
    %v1211 = vunpack.c.l.b16 %v168
    %v1212 = vunpack.c.h.b16 %v168
    %v1213 = vunpack.c.l.b16 %v169
    %v1214 = vunpack.c.h.b16 %v169
    %v1215 = vunpack.c.l.b16 %v170
    %v1216 = vunpack.c.h.b16 %v170
    %v1217 = vunpack.c.l.b16 %v171
    %v1218 = vunpack.c.h.b16 %v171
    %v1219 = vunpack.c.l.b16 %v172
    %v1220 = vunpack.c.h.b16 %v172
    %v1221 = vunpack.c.l.b16 %v173
    %v1222 = vunpack.c.h.b16 %v173
    %v1223 = vunpack.c.l.b16 %v174
    %v1224 = vunpack.c.h.b16 %v174
    %v1225 = vunpack.c.l.b16 %v175
    %v1226 = vunpack.c.h.b16 %v175
    %v1227 = vunpack.c.l.b16 %v176
    %v1228 = vunpack.c.h.b16 %v176
    %v1229 = vunpack.c.l.b16 %v177
    %v1230 = vunpack.c.h.b16 %v177
    %v1231 = vunpack.c.l.b16 %v178
    %v1232 = vunpack.c.h.b16 %v178
    %v1233 = vunpack.c.l.b16 %v179
    %v1234 = vunpack.c.h.b16 %v179
    %v1235 = vunpack.c.l.b16 %v180
    %v1236 = vunpack.c.h.b16 %v180
    %v1237 = vunpack.c.l.b16 %v181
    %v1238 = vunpack.c.h.b16 %v181
    %v1239 = vunpack.c.l.b16 %v182
    %v1240 = vunpack.c.h.b16 %v182
    %v1241 = vunpack.c.l.b16 %v183
    %v1242 = vunpack.c.h.b16 %v183
    %v1243 = vunpack.c.l.b16 %v184
    %v1244 = vunpack.c.h.b16 %v184
    %v1245 = vunpack.c.l.b16 %v185
    %v1246 = vunpack.c.h.b16 %v185
    %v1247 = vunpack.c.l.b16 %v186
    %v1248 = vunpack.c.h.b16 %v186
    %v1249 = vunpack.c.l.b16 %v187
    %v1250 = vunpack.c.h.b16 %v187
    %v1251 = vunpack.c.l.b16 %v188
    %v1252 = vunpack.c.h.b16 %v188
    %v1253 = vunpack.c.l.b16 %v189
    %v1254 = vunpack.c.h.b16 %v189
    %v1255 = vunpack.c.l.b16 %v190
    %v1256 = vunpack.c.h.b16 %v190
    %v1257 = vunpack.c.l.b16 %v191
    %v1258 = vunpack.c.h.b16 %v191
    %v1259 = vunpack.c.l.b16 %v192
    %v1260 = vunpack.c.h.b16 %v192
    %v1261 = vunpack.c.l.b16 %v193
    %v1262 = vunpack.c.h.b16 %v193
    %v1263 = vunpack.c.l.b16 %v194
    %v1264 = vunpack.c.h.b16 %v194
    %v1265 = vunpack.c.l.b16 %v195
    %v1266 = vunpack.c.h.b16 %v195
    %v1267 = vunpack.c.l.b16 %v196
    %v1268 = vunpack.c.h.b16 %v196
    %v1269 = vunpack.c.l.b16 %v197
    %v1270 = vunpack.c.h.b16 %v197
    %v1271 = vunpack.c.l.b16 %v198
    %v1272 = vunpack.c.h.b16 %v198
    %v1273 = vunpack.c.l.b16 %v199
    %v1274 = vunpack.c.h.b16 %v199
    %v1275 = vpack.c.b16 %v1213, %v1211
    %v1276 = vpack.c.b16 %v1214, %v1212
    %v1277 = vpack.c.b16 %v1217, %v1215
    %v1278 = vpack.c.b16 %v1218, %v1216
    %v1279 = vpack.c.b16 %v1221, %v1219
    %v1280 = vpack.c.b16 %v1222, %v1220
    %v1281 = vpack.c.b16 %v1225, %v1223
    %v1282 = vpack.c.b16 %v1226, %v1224
    %v1283 = vpack.c.b16 %v1229, %v1227
    %v1284 = vpack.c.b16 %v1230, %v1228
    %v1285 = vpack.c.b16 %v1233, %v1231
    %v1286 = vpack.c.b16 %v1234, %v1232
    %v1287 = vpack.c.b16 %v1237, %v1235
    %v1288 = vpack.c.b16 %v1238, %v1236
    %v1289 = vpack.c.b16 %v1241, %v1239
    %v1290 = vpack.c.b16 %v1242, %v1240
    %v1291 = vpack.c.b16 %v1245, %v1243
    %v1292 = vpack.c.b16 %v1246, %v1244
    %v1293 = vpack.c.b16 %v1249, %v1247
    %v1294 = vpack.c.b16 %v1250, %v1248
    %v1295 = vpack.c.b16 %v1253, %v1251
    %v1296 = vpack.c.b16 %v1254, %v1252
    %v1297 = vpack.c.b16 %v1257, %v1255
    %v1298 = vpack.c.b16 %v1258, %v1256
    %v1299 = vpack.c.b16 %v1261, %v1259
    %v1300 = vpack.c.b16 %v1262, %v1260
    %v1301 = vpack.c.b16 %v1265, %v1263
    %v1302 = vpack.c.b16 %v1266, %v1264
    %v1303 = vpack.c.b16 %v1269, %v1267
    %v1304 = vpack.c.b16 %v1270, %v1268
    %v1305 = vpack.c.b16 %v1273, %v1271
    %v1306 = vpack.c.b16 %v1274, %v1272
    %1339 = vmatprep.subr.bf16.mxu0 %v1276
    %1340 = vmatpush1.bf16.msra.mxu0 %v1275
    %1341 = vmatprep.subr.bf16.mxu0 %v1278
    %1342 = vmatpush1.bf16.msra.mxu0 %v1277
    %1343 = vmatprep.subr.bf16.mxu0 %v1280
    %1344 = vmatpush1.bf16.msra.mxu0 %v1279
    %1345 = vmatprep.subr.bf16.mxu0 %v1282
    %1346 = vmatpush1.bf16.msra.mxu0 %v1281
    %1347 = vmatprep.subr.bf16.mxu0 %v1284
    %1348 = vmatpush1.bf16.msra.mxu0 %v1283
    %1349 = vmatprep.subr.bf16.mxu0 %v1286
    %1350 = vmatpush1.bf16.msra.mxu0 %v1285
    %1351 = vmatprep.subr.bf16.mxu0 %v1288
    %1352 = vmatpush1.bf16.msra.mxu0 %v1287
    %1353 = vmatprep.subr.bf16.mxu0 %v1290
    %1354 = vmatpush1.bf16.msra.mxu0 %v1289
    %1355 = vmatprep.subr.bf16.mxu0 %v1292
    %1356 = vmatpush1.bf16.msra.mxu0 %v1291
    %1357 = vmatprep.subr.bf16.mxu0 %v1294
    %1358 = vmatpush1.bf16.msra.mxu0 %v1293
    %1359 = vmatprep.subr.bf16.mxu0 %v1296
    %1360 = vmatpush1.bf16.msra.mxu0 %v1295
    %1361 = vmatprep.subr.bf16.mxu0 %v1298
    %1362 = vmatpush1.bf16.msra.mxu0 %v1297
    %1363 = vmatprep.subr.bf16.mxu0 %v1300
    %1364 = vmatpush1.bf16.msra.mxu0 %v1299
    %1365 = vmatprep.subr.bf16.mxu0 %v1302
    %1366 = vmatpush1.bf16.msra.mxu0 %v1301
    %1367 = vmatprep.subr.bf16.mxu0 %v1304
    %1368 = vmatpush1.bf16.msra.mxu0 %v1303
    %1369 = vmatprep.subr.bf16.mxu0 %v1306
    %1370 = vmatpush1.bf16.msra.mxu0 %v1305
    %1371 = vmatprep.mubr.bf16.mxu0 %v1165
    %1372 = vmatmul.mubr.bf16.gmra.mrb[0].mxu0 %v1164
    %v1373 = vpop.f32.mrb[0].mxu0
    %v1374 = vadd.f32 %v1172, %v1373
    %v1375 = vpop.f32.mrb[0].mxu0
    %v1376 = vadd.f32 %v1176, %v1375
    %v1377 = vpop.f32.mrb[0].mxu0
    %v1378 = vadd.f32 %v1172, %v1377
    %v1379 = vpop.f32.mrb[0].mxu0
    %v1380 = vadd.f32 %v1176, %v1379
    %1381 = vmatprep.mubr.bf16.mxu0 %v1167
    %1382 = vmatmul.mubr.bf16.gmra.mrb[0].mxu0 %v1166
    %v1383 = vpop.f32.mrb[0].mxu0
    %v1384 = vadd.f32 %v1172, %v1383
    %v1385 = vpop.f32.mrb[0].mxu0
    %v1386 = vadd.f32 %v1176, %v1385
    %v1387 = vpop.f32.mrb[0].mxu0
    %v1388 = vadd.f32 %v1172, %v1387
    %v1389 = vpop.f32.mrb[0].mxu0
    %v1390 = vadd.f32 %v1176, %v1389
    %1391 = vdwg.mxu0
    %v1392 = vmax.f32 %v1374, 0.0
    %v1393 = vmax.f32 %v1376, 0.0
    %v1394 = vmax.f32 %v1378, 0.0
    %v1395 = vmax.f32 %v1380, 0.0
    %v1396 = vmax.f32 %v1384, 0.0
    %v1397 = vmax.f32 %v1386, 0.0
    %v1398 = vmax.f32 %v1388, 0.0
    %v1399 = vmax.f32 %v1390, 0.0
    %v1400 = vpack.c.bf16 %v1394, %v1392
    %v1401 = vpack.c.bf16 %v1395, %v1393
    %v1402 = vpack.c.bf16 %v1398, %v1396
    %v1403 = vpack.c.bf16 %v1399, %v1397
    %v1405 = vlaneseq
    %v1406 = vshrl.u32 %v1405, 7
    %v1407 = vsub.s32 0, %v1406
    %v1408 = vrot.slane %v330, %v1407
    %v1409 = vlaneseq
    %v1410 = vshrl.u32 %v1409, 7
    %v1411 = vsub.s32 1, %v1410
    %v1412 = vrot.slane %v330, %v1411
    %v1413 = vlaneseq
    %v1414 = vshrl.u32 %v1413, 7
    %v1415 = vsub.s32 2, %v1414
    %v1416 = vrot.slane %v330, %v1415
    %v1417 = vlaneseq
    %v1418 = vshrl.u32 %v1417, 7
    %v1419 = vsub.s32 3, %v1418
    %v1420 = vrot.slane %v330, %v1419
    %v1421 = vlaneseq
    %v1422 = vshrl.u32 %v1421, 7
    %v1423 = vsub.s32 4, %v1422
    %v1424 = vrot.slane %v330, %v1423
    %v1425 = vlaneseq
    %v1426 = vshrl.u32 %v1425, 7
    %v1427 = vsub.s32 5, %v1426
    %v1428 = vrot.slane %v330, %v1427
    %v1429 = vlaneseq
    %v1430 = vshrl.u32 %v1429, 7
    %v1431 = vsub.s32 6, %v1430
    %v1432 = vrot.slane %v330, %v1431
    %v1568 = vunpack.c.l.b16 %v200
    %v1569 = vunpack.c.h.b16 %v200
    %v1570 = vunpack.c.l.b16 %v201
    %v1571 = vunpack.c.h.b16 %v201
    %v1572 = vunpack.c.l.b16 %v202
    %v1573 = vunpack.c.h.b16 %v202
    %v1574 = vunpack.c.l.b16 %v203
    %v1575 = vunpack.c.l.b16 %v204
    %v1576 = vunpack.c.h.b16 %v204
    %v1577 = vunpack.c.l.b16 %v205
    %v1578 = vunpack.c.h.b16 %v205
    %v1579 = vunpack.c.l.b16 %v206
    %v1580 = vunpack.c.h.b16 %v206
    %v1581 = vunpack.c.l.b16 %v207
    %v1582 = vunpack.c.l.b16 %v208
    %v1583 = vunpack.c.h.b16 %v208
    %v1584 = vunpack.c.l.b16 %v209
    %v1585 = vunpack.c.h.b16 %v209
    %v1586 = vunpack.c.l.b16 %v210
    %v1587 = vunpack.c.h.b16 %v210
    %v1588 = vunpack.c.l.b16 %v211
    %v1589 = vunpack.c.l.b16 %v212
    %v1590 = vunpack.c.h.b16 %v212
    %v1591 = vunpack.c.l.b16 %v213
    %v1592 = vunpack.c.h.b16 %v213
    %v1593 = vunpack.c.l.b16 %v214
    %v1594 = vunpack.c.h.b16 %v214
    %v1595 = vunpack.c.l.b16 %v215
    %v1596 = vunpack.c.l.b16 %v216
    %v1597 = vunpack.c.h.b16 %v216
    %v1598 = vunpack.c.l.b16 %v217
    %v1599 = vunpack.c.h.b16 %v217
    %v1600 = vunpack.c.l.b16 %v218
    %v1601 = vunpack.c.h.b16 %v218
    %v1602 = vunpack.c.l.b16 %v219
    %v1603 = vunpack.c.l.b16 %v220
    %v1604 = vunpack.c.h.b16 %v220
    %v1605 = vunpack.c.l.b16 %v221
    %v1606 = vunpack.c.h.b16 %v221
    %v1607 = vunpack.c.l.b16 %v222
    %v1608 = vunpack.c.h.b16 %v222
    %v1609 = vunpack.c.l.b16 %v223
    %v1610 = vunpack.c.l.b16 %v224
    %v1611 = vunpack.c.h.b16 %v224
    %v1612 = vunpack.c.l.b16 %v225
    %v1613 = vunpack.c.h.b16 %v225
    %v1614 = vunpack.c.l.b16 %v226
    %v1615 = vunpack.c.h.b16 %v226
    %v1616 = vunpack.c.l.b16 %v227
    %v1617 = vunpack.c.l.b16 %v228
    %v1618 = vunpack.c.h.b16 %v228
    %v1619 = vunpack.c.l.b16 %v229
    %v1620 = vunpack.c.h.b16 %v229
    %v1621 = vunpack.c.l.b16 %v230
    %v1622 = vunpack.c.h.b16 %v230
    %v1623 = vunpack.c.l.b16 %v231
    %v1624 = vunpack.c.l.b16 %v232
    %v1625 = vunpack.c.h.b16 %v232
    %v1626 = vunpack.c.l.b16 %v233
    %v1627 = vunpack.c.h.b16 %v233
    %v1628 = vunpack.c.l.b16 %v234
    %v1629 = vunpack.c.h.b16 %v234
    %v1630 = vunpack.c.l.b16 %v235
    %v1631 = vunpack.c.l.b16 %v236
    %v1632 = vunpack.c.h.b16 %v236
    %v1633 = vunpack.c.l.b16 %v237
    %v1634 = vunpack.c.h.b16 %v237
    %v1635 = vunpack.c.l.b16 %v238
    %v1636 = vunpack.c.h.b16 %v238
    %v1637 = vunpack.c.l.b16 %v239
    %v1638 = vunpack.c.l.b16 %v240
    %v1639 = vunpack.c.h.b16 %v240
    %v1640 = vunpack.c.l.b16 %v241
    %v1641 = vunpack.c.h.b16 %v241
    %v1642 = vunpack.c.l.b16 %v242
    %v1643 = vunpack.c.h.b16 %v242
    %v1644 = vunpack.c.l.b16 %v243
    %v1645 = vunpack.c.l.b16 %v244
    %v1646 = vunpack.c.h.b16 %v244
    %v1647 = vunpack.c.l.b16 %v245
    %v1648 = vunpack.c.h.b16 %v245
    %v1649 = vunpack.c.l.b16 %v246
    %v1650 = vunpack.c.h.b16 %v246
    %v1651 = vunpack.c.l.b16 %v247
    %v1652 = vunpack.c.l.b16 %v248
    %v1653 = vunpack.c.h.b16 %v248
    %v1654 = vunpack.c.l.b16 %v249
    %v1655 = vunpack.c.h.b16 %v249
    %v1656 = vunpack.c.l.b16 %v250
    %v1657 = vunpack.c.h.b16 %v250
    %v1658 = vunpack.c.l.b16 %v251
    %v1659 = vunpack.c.l.b16 %v252
    %v1660 = vunpack.c.h.b16 %v252
    %v1661 = vunpack.c.l.b16 %v253
    %v1662 = vunpack.c.h.b16 %v253
    %v1663 = vunpack.c.l.b16 %v254
    %v1664 = vunpack.c.h.b16 %v254
    %v1665 = vunpack.c.l.b16 %v255
    %v1666 = vunpack.c.l.b16 %v256
    %v1667 = vunpack.c.h.b16 %v256
    %v1668 = vunpack.c.l.b16 %v257
    %v1669 = vunpack.c.h.b16 %v257
    %v1670 = vunpack.c.l.b16 %v258
    %v1671 = vunpack.c.h.b16 %v258
    %v1672 = vunpack.c.l.b16 %v259
    %v1673 = vunpack.c.l.b16 %v260
    %v1674 = vunpack.c.h.b16 %v260
    %v1675 = vunpack.c.l.b16 %v261
    %v1676 = vunpack.c.h.b16 %v261
    %v1677 = vunpack.c.l.b16 %v262
    %v1678 = vunpack.c.h.b16 %v262
    %v1679 = vunpack.c.l.b16 %v263
    %v1680 = vunpack.c.l.b16 %v264
    %v1681 = vunpack.c.h.b16 %v264
    %v1682 = vunpack.c.l.b16 %v265
    %v1683 = vunpack.c.h.b16 %v265
    %v1684 = vunpack.c.l.b16 %v266
    %v1685 = vunpack.c.h.b16 %v266
    %v1686 = vunpack.c.l.b16 %v267
    %v1687 = vunpack.c.l.b16 %v268
    %v1688 = vunpack.c.h.b16 %v268
    %v1689 = vunpack.c.l.b16 %v269
    %v1690 = vunpack.c.h.b16 %v269
    %v1691 = vunpack.c.l.b16 %v270
    %v1692 = vunpack.c.h.b16 %v270
    %v1693 = vunpack.c.l.b16 %v271
    %v1694 = vunpack.c.l.b16 %v272
    %v1695 = vunpack.c.h.b16 %v272
    %v1696 = vunpack.c.l.b16 %v273
    %v1697 = vunpack.c.h.b16 %v273
    %v1698 = vunpack.c.l.b16 %v274
    %v1699 = vunpack.c.h.b16 %v274
    %v1700 = vunpack.c.l.b16 %v275
    %v1701 = vunpack.c.l.b16 %v276
    %v1702 = vunpack.c.h.b16 %v276
    %v1703 = vunpack.c.l.b16 %v277
    %v1704 = vunpack.c.h.b16 %v277
    %v1705 = vunpack.c.l.b16 %v278
    %v1706 = vunpack.c.h.b16 %v278
    %v1707 = vunpack.c.l.b16 %v279
    %v1708 = vunpack.c.l.b16 %v280
    %v1709 = vunpack.c.h.b16 %v280
    %v1710 = vunpack.c.l.b16 %v281
    %v1711 = vunpack.c.h.b16 %v281
    %v1712 = vunpack.c.l.b16 %v282
    %v1713 = vunpack.c.h.b16 %v282
    %v1714 = vunpack.c.l.b16 %v283
    %v1715 = vunpack.c.l.b16 %v284
    %v1716 = vunpack.c.h.b16 %v284
    %v1717 = vunpack.c.l.b16 %v285
    %v1718 = vunpack.c.h.b16 %v285
    %v1719 = vunpack.c.l.b16 %v286
    %v1720 = vunpack.c.h.b16 %v286
    %v1721 = vunpack.c.l.b16 %v287
    %v1722 = vunpack.c.l.b16 %v288
    %v1723 = vunpack.c.h.b16 %v288
    %v1724 = vunpack.c.l.b16 %v289
    %v1725 = vunpack.c.h.b16 %v289
    %v1726 = vunpack.c.l.b16 %v290
    %v1727 = vunpack.c.h.b16 %v290
    %v1728 = vunpack.c.l.b16 %v291
    %v1729 = vunpack.c.l.b16 %v292
    %v1730 = vunpack.c.h.b16 %v292
    %v1731 = vunpack.c.l.b16 %v293
    %v1732 = vunpack.c.h.b16 %v293
    %v1733 = vunpack.c.l.b16 %v294
    %v1734 = vunpack.c.h.b16 %v294
    %v1735 = vunpack.c.l.b16 %v295
    %v1736 = vunpack.c.l.b16 %v296
    %v1737 = vunpack.c.h.b16 %v296
    %v1738 = vunpack.c.l.b16 %v297
    %v1739 = vunpack.c.h.b16 %v297
    %v1740 = vunpack.c.l.b16 %v298
    %v1741 = vunpack.c.h.b16 %v298
    %v1742 = vunpack.c.l.b16 %v299
    %v1743 = vunpack.c.l.b16 %v300
    %v1744 = vunpack.c.h.b16 %v300
    %v1745 = vunpack.c.l.b16 %v301
    %v1746 = vunpack.c.h.b16 %v301
    %v1747 = vunpack.c.l.b16 %v302
    %v1748 = vunpack.c.h.b16 %v302
    %v1749 = vunpack.c.l.b16 %v303
    %v1750 = vunpack.c.l.b16 %v304
    %v1751 = vunpack.c.h.b16 %v304
    %v1752 = vunpack.c.l.b16 %v305
    %v1753 = vunpack.c.h.b16 %v305
    %v1754 = vunpack.c.l.b16 %v306
    %v1755 = vunpack.c.h.b16 %v306
    %v1756 = vunpack.c.l.b16 %v307
    %v1757 = vunpack.c.l.b16 %v308
    %v1758 = vunpack.c.h.b16 %v308
    %v1759 = vunpack.c.l.b16 %v309
    %v1760 = vunpack.c.h.b16 %v309
    %v1761 = vunpack.c.l.b16 %v310
    %v1762 = vunpack.c.h.b16 %v310
    %v1763 = vunpack.c.l.b16 %v311
    %v1764 = vunpack.c.l.b16 %v312
    %v1765 = vunpack.c.h.b16 %v312
    %v1766 = vunpack.c.l.b16 %v313
    %v1767 = vunpack.c.h.b16 %v313
    %v1768 = vunpack.c.l.b16 %v314
    %v1769 = vunpack.c.h.b16 %v314
    %v1770 = vunpack.c.l.b16 %v315
    %v1771 = vunpack.c.l.b16 %v316
    %v1772 = vunpack.c.h.b16 %v316
    %v1773 = vunpack.c.l.b16 %v317
    %v1774 = vunpack.c.h.b16 %v317
    %v1775 = vunpack.c.l.b16 %v318
    %v1776 = vunpack.c.h.b16 %v318
    %v1777 = vunpack.c.l.b16 %v319
    %v1778 = vunpack.c.l.b16 %v320
    %v1779 = vunpack.c.h.b16 %v320
    %v1780 = vunpack.c.l.b16 %v321
    %v1781 = vunpack.c.h.b16 %v321
    %v1782 = vunpack.c.l.b16 %v322
    %v1783 = vunpack.c.h.b16 %v322
    %v1784 = vunpack.c.l.b16 %v323
    %v1785 = vunpack.c.l.b16 %v324
    %v1786 = vunpack.c.h.b16 %v324
    %v1787 = vunpack.c.l.b16 %v325
    %v1788 = vunpack.c.h.b16 %v325
    %v1789 = vunpack.c.l.b16 %v326
    %v1790 = vunpack.c.h.b16 %v326
    %v1791 = vunpack.c.l.b16 %v327
    %v1792 = vpack.c.b16 %v1575, %v1568
    %v1793 = vpack.c.b16 %v1576, %v1569
    %v1794 = vpack.c.b16 %v1577, %v1570
    %v1795 = vpack.c.b16 %v1578, %v1571
    %v1796 = vpack.c.b16 %v1579, %v1572
    %v1797 = vpack.c.b16 %v1580, %v1573
    %v1798 = vpack.c.b16 %v1581, %v1574
    %v1799 = vpack.c.b16 %v1589, %v1582
    %v1800 = vpack.c.b16 %v1590, %v1583
    %v1801 = vpack.c.b16 %v1591, %v1584
    %v1802 = vpack.c.b16 %v1592, %v1585
    %v1803 = vpack.c.b16 %v1593, %v1586
    %v1804 = vpack.c.b16 %v1594, %v1587
    %v1805 = vpack.c.b16 %v1595, %v1588
    %v1806 = vpack.c.b16 %v1603, %v1596
    %v1807 = vpack.c.b16 %v1604, %v1597
    %v1808 = vpack.c.b16 %v1605, %v1598
    %v1809 = vpack.c.b16 %v1606, %v1599
    %v1810 = vpack.c.b16 %v1607, %v1600
    %v1811 = vpack.c.b16 %v1608, %v1601
    %v1812 = vpack.c.b16 %v1609, %v1602
    %v1813 = vpack.c.b16 %v1617, %v1610
    %v1814 = vpack.c.b16 %v1618, %v1611
    %v1815 = vpack.c.b16 %v1619, %v1612
    %v1816 = vpack.c.b16 %v1620, %v1613
    %v1817 = vpack.c.b16 %v1621, %v1614
    %v1818 = vpack.c.b16 %v1622, %v1615
    %v1819 = vpack.c.b16 %v1623, %v1616
    %v1820 = vpack.c.b16 %v1631, %v1624
    %v1821 = vpack.c.b16 %v1632, %v1625
    %v1822 = vpack.c.b16 %v1633, %v1626
    %v1823 = vpack.c.b16 %v1634, %v1627
    %v1824 = vpack.c.b16 %v1635, %v1628
    %v1825 = vpack.c.b16 %v1636, %v1629
    %v1826 = vpack.c.b16 %v1637, %v1630
    %v1827 = vpack.c.b16 %v1645, %v1638
    %v1828 = vpack.c.b16 %v1646, %v1639
    %v1829 = vpack.c.b16 %v1647, %v1640
    %v1830 = vpack.c.b16 %v1648, %v1641
    %v1831 = vpack.c.b16 %v1649, %v1642
    %v1832 = vpack.c.b16 %v1650, %v1643
    %v1833 = vpack.c.b16 %v1651, %v1644
    %v1834 = vpack.c.b16 %v1659, %v1652
    %v1835 = vpack.c.b16 %v1660, %v1653
    %v1836 = vpack.c.b16 %v1661, %v1654
    %v1837 = vpack.c.b16 %v1662, %v1655
    %v1838 = vpack.c.b16 %v1663, %v1656
    %v1839 = vpack.c.b16 %v1664, %v1657
    %v1840 = vpack.c.b16 %v1665, %v1658
    %v1841 = vpack.c.b16 %v1673, %v1666
    %v1842 = vpack.c.b16 %v1674, %v1667
    %v1843 = vpack.c.b16 %v1675, %v1668
    %v1844 = vpack.c.b16 %v1676, %v1669
    %v1845 = vpack.c.b16 %v1677, %v1670
    %v1846 = vpack.c.b16 %v1678, %v1671
    %v1847 = vpack.c.b16 %v1679, %v1672
    %v1848 = vpack.c.b16 %v1687, %v1680
    %v1849 = vpack.c.b16 %v1688, %v1681
    %v1850 = vpack.c.b16 %v1689, %v1682
    %v1851 = vpack.c.b16 %v1690, %v1683
    %v1852 = vpack.c.b16 %v1691, %v1684
    %v1853 = vpack.c.b16 %v1692, %v1685
    %v1854 = vpack.c.b16 %v1693, %v1686
    %v1855 = vpack.c.b16 %v1701, %v1694
    %v1856 = vpack.c.b16 %v1702, %v1695
    %v1857 = vpack.c.b16 %v1703, %v1696
    %v1858 = vpack.c.b16 %v1704, %v1697
    %v1859 = vpack.c.b16 %v1705, %v1698
    %v1860 = vpack.c.b16 %v1706, %v1699
    %v1861 = vpack.c.b16 %v1707, %v1700
    %v1862 = vpack.c.b16 %v1715, %v1708
    %v1863 = vpack.c.b16 %v1716, %v1709
    %v1864 = vpack.c.b16 %v1717, %v1710
    %v1865 = vpack.c.b16 %v1718, %v1711
    %v1866 = vpack.c.b16 %v1719, %v1712
    %v1867 = vpack.c.b16 %v1720, %v1713
    %v1868 = vpack.c.b16 %v1721, %v1714
    %v1869 = vpack.c.b16 %v1729, %v1722
    %v1870 = vpack.c.b16 %v1730, %v1723
    %v1871 = vpack.c.b16 %v1731, %v1724
    %v1872 = vpack.c.b16 %v1732, %v1725
    %v1873 = vpack.c.b16 %v1733, %v1726
    %v1874 = vpack.c.b16 %v1734, %v1727
    %v1875 = vpack.c.b16 %v1735, %v1728
    %v1876 = vpack.c.b16 %v1743, %v1736
    %v1877 = vpack.c.b16 %v1744, %v1737
    %v1878 = vpack.c.b16 %v1745, %v1738
    %v1879 = vpack.c.b16 %v1746, %v1739
    %v1880 = vpack.c.b16 %v1747, %v1740
    %v1881 = vpack.c.b16 %v1748, %v1741
    %v1882 = vpack.c.b16 %v1749, %v1742
    %v1883 = vpack.c.b16 %v1757, %v1750
    %v1884 = vpack.c.b16 %v1758, %v1751
    %v1885 = vpack.c.b16 %v1759, %v1752
    %v1886 = vpack.c.b16 %v1760, %v1753
    %v1887 = vpack.c.b16 %v1761, %v1754
    %v1888 = vpack.c.b16 %v1762, %v1755
    %v1889 = vpack.c.b16 %v1763, %v1756
    %v1890 = vpack.c.b16 %v1771, %v1764
    %v1891 = vpack.c.b16 %v1772, %v1765
    %v1892 = vpack.c.b16 %v1773, %v1766
    %v1893 = vpack.c.b16 %v1774, %v1767
    %v1894 = vpack.c.b16 %v1775, %v1768
    %v1895 = vpack.c.b16 %v1776, %v1769
    %v1896 = vpack.c.b16 %v1777, %v1770
    %v1897 = vpack.c.b16 %v1785, %v1778
    %v1898 = vpack.c.b16 %v1786, %v1779
    %v1899 = vpack.c.b16 %v1787, %v1780
    %v1900 = vpack.c.b16 %v1788, %v1781
    %v1901 = vpack.c.b16 %v1789, %v1782
    %v1902 = vpack.c.b16 %v1790, %v1783
    %v1903 = vpack.c.b16 %v1791, %v1784
    %2016 = vmatprep.subr.bf16.mxu0 %v1793
    %2017 = vmatpush1.bf16.msra.mxu0 %v1792
    %2018 = vmatprep.subr.bf16.mxu0 %v1800
    %2019 = vmatpush1.bf16.msra.mxu0 %v1799
    %2020 = vmatprep.subr.bf16.mxu0 %v1807
    %2021 = vmatpush1.bf16.msra.mxu0 %v1806
    %2022 = vmatprep.subr.bf16.mxu0 %v1814
    %2023 = vmatpush1.bf16.msra.mxu0 %v1813
    %2024 = vmatprep.subr.bf16.mxu0 %v1821
    %2025 = vmatpush1.bf16.msra.mxu0 %v1820
    %2026 = vmatprep.subr.bf16.mxu0 %v1828
    %2027 = vmatpush1.bf16.msra.mxu0 %v1827
    %2028 = vmatprep.subr.bf16.mxu0 %v1835
    %2029 = vmatpush1.bf16.msra.mxu0 %v1834
    %2030 = vmatprep.subr.bf16.mxu0 %v1842
    %2031 = vmatpush1.bf16.msra.mxu0 %v1841
    %2032 = vmatprep.subr.bf16.mxu0 %v1849
    %2033 = vmatpush1.bf16.msra.mxu0 %v1848
    %2034 = vmatprep.subr.bf16.mxu0 %v1856
    %2035 = vmatpush1.bf16.msra.mxu0 %v1855
    %2036 = vmatprep.subr.bf16.mxu0 %v1863
    %2037 = vmatpush1.bf16.msra.mxu0 %v1862
    %2038 = vmatprep.subr.bf16.mxu0 %v1870
    %2039 = vmatpush1.bf16.msra.mxu0 %v1869
    %2040 = vmatprep.subr.bf16.mxu0 %v1877
    %2041 = vmatpush1.bf16.msra.mxu0 %v1876
    %2042 = vmatprep.subr.bf16.mxu0 %v1884
    %2043 = vmatpush1.bf16.msra.mxu0 %v1883
    %2044 = vmatprep.subr.bf16.mxu0 %v1891
    %2045 = vmatpush1.bf16.msra.mxu0 %v1890
    %2046 = vmatprep.subr.bf16.mxu0 %v1898
    %2047 = vmatpush1.bf16.msra.mxu0 %v1897
    %2048 = vmatprep.mubr.bf16.mxu0 %v1401
    %2049 = vmatmul.mubr.bf16.gmra.mrb[0].mxu0 %v1400
    %v2050 = vpop.f32.mrb[0].mxu0
    %v2051 = vadd.f32 %v1408, %v2050
    %v2052 = vpop.f32.mrb[0].mxu0
    %v2053 = vadd.f32 %v1412, %v2052
    %v2054 = vpop.f32.mrb[0].mxu0
    %v2055 = vadd.f32 %v1408, %v2054
    %v2056 = vpop.f32.mrb[0].mxu0
    %v2057 = vadd.f32 %v1412, %v2056
    %2058 = vmatprep.mubr.bf16.mxu0 %v1403
    %2059 = vmatmul.mubr.bf16.gmra.mrb[0].mxu0 %v1402
    %v2060 = vpop.f32.mrb[0].mxu0
    %v2061 = vadd.f32 %v1408, %v2060
    %v2062 = vpop.f32.mrb[0].mxu0
    %v2063 = vadd.f32 %v1412, %v2062
    %v2064 = vpop.f32.mrb[0].mxu0
    %v2065 = vadd.f32 %v1408, %v2064
    %v2066 = vpop.f32.mrb[0].mxu0
    %v2067 = vadd.f32 %v1412, %v2066
    %2068 = vdwg.mxu0
    %2069 = vmatprep.subr.bf16.mxu0 %v1795
    %2070 = vmatpush1.bf16.msra.mxu0 %v1794
    %2071 = vmatprep.subr.bf16.mxu0 %v1802
    %2072 = vmatpush1.bf16.msra.mxu0 %v1801
    %2073 = vmatprep.subr.bf16.mxu0 %v1809
    %2074 = vmatpush1.bf16.msra.mxu0 %v1808
    %2075 = vmatprep.subr.bf16.mxu0 %v1816
    %2076 = vmatpush1.bf16.msra.mxu0 %v1815
    %2077 = vmatprep.subr.bf16.mxu0 %v1823
    %2078 = vmatpush1.bf16.msra.mxu0 %v1822
    %2079 = vmatprep.subr.bf16.mxu0 %v1830
    %2080 = vmatpush1.bf16.msra.mxu0 %v1829
    %2081 = vmatprep.subr.bf16.mxu0 %v1837
    %2082 = vmatpush1.bf16.msra.mxu0 %v1836
    %2083 = vmatprep.subr.bf16.mxu0 %v1844
    %2084 = vmatpush1.bf16.msra.mxu0 %v1843
    %2085 = vmatprep.subr.bf16.mxu0 %v1851
    %2086 = vmatpush1.bf16.msra.mxu0 %v1850
    %2087 = vmatprep.subr.bf16.mxu0 %v1858
    %2088 = vmatpush1.bf16.msra.mxu0 %v1857
    %2089 = vmatprep.subr.bf16.mxu0 %v1865
    %2090 = vmatpush1.bf16.msra.mxu0 %v1864
    %2091 = vmatprep.subr.bf16.mxu0 %v1872
    %2092 = vmatpush1.bf16.msra.mxu0 %v1871
    %2093 = vmatprep.subr.bf16.mxu0 %v1879
    %2094 = vmatpush1.bf16.msra.mxu0 %v1878
    %2095 = vmatprep.subr.bf16.mxu0 %v1886
    %2096 = vmatpush1.bf16.msra.mxu0 %v1885
    %2097 = vmatprep.subr.bf16.mxu0 %v1893
    %2098 = vmatpush1.bf16.msra.mxu0 %v1892
    %2099 = vmatprep.subr.bf16.mxu0 %v1900
    %2100 = vmatpush1.bf16.msra.mxu0 %v1899
    %2101 = vmatprep.mubr.bf16.mxu0 %v1401
    %2102 = vmatmul.mubr.bf16.gmra.mrb[0].mxu0 %v1400
    %v2103 = vpop.f32.mrb[0].mxu0
    %v2104 = vadd.f32 %v1416, %v2103
    %v2105 = vpop.f32.mrb[0].mxu0
    %v2106 = vadd.f32 %v1420, %v2105
    %v2107 = vpop.f32.mrb[0].mxu0
    %v2108 = vadd.f32 %v1416, %v2107
    %v2109 = vpop.f32.mrb[0].mxu0
    %v2110 = vadd.f32 %v1420, %v2109
    %2111 = vmatprep.mubr.bf16.mxu0 %v1403
    %2112 = vmatmul.mubr.bf16.gmra.mrb[0].mxu0 %v1402
    %v2113 = vpop.f32.mrb[0].mxu0
    %v2114 = vadd.f32 %v1416, %v2113
    %v2115 = vpop.f32.mrb[0].mxu0
    %v2116 = vadd.f32 %v1420, %v2115
    %v2117 = vpop.f32.mrb[0].mxu0
    %v2118 = vadd.f32 %v1416, %v2117
    %v2119 = vpop.f32.mrb[0].mxu0
    %v2120 = vadd.f32 %v1420, %v2119
    %2121 = vdwg.mxu0
    %2122 = vmatprep.subr.bf16.mxu0 %v1797
    %2123 = vmatpush1.bf16.msra.mxu0 %v1796
    %2124 = vmatprep.subr.bf16.mxu0 %v1804
    %2125 = vmatpush1.bf16.msra.mxu0 %v1803
    %2126 = vmatprep.subr.bf16.mxu0 %v1811
    %2127 = vmatpush1.bf16.msra.mxu0 %v1810
    %2128 = vmatprep.subr.bf16.mxu0 %v1818
    %2129 = vmatpush1.bf16.msra.mxu0 %v1817
    %2130 = vmatprep.subr.bf16.mxu0 %v1825
    %2131 = vmatpush1.bf16.msra.mxu0 %v1824
    %2132 = vmatprep.subr.bf16.mxu0 %v1832
    %2133 = vmatpush1.bf16.msra.mxu0 %v1831
    %2134 = vmatprep.subr.bf16.mxu0 %v1839
    %2135 = vmatpush1.bf16.msra.mxu0 %v1838
    %2136 = vmatprep.subr.bf16.mxu0 %v1846
    %2137 = vmatpush1.bf16.msra.mxu0 %v1845
    %2138 = vmatprep.subr.bf16.mxu0 %v1853
    %2139 = vmatpush1.bf16.msra.mxu0 %v1852
    %2140 = vmatprep.subr.bf16.mxu0 %v1860
    %2141 = vmatpush1.bf16.msra.mxu0 %v1859
    %2142 = vmatprep.subr.bf16.mxu0 %v1867
    %2143 = vmatpush1.bf16.msra.mxu0 %v1866
    %2144 = vmatprep.subr.bf16.mxu0 %v1874
    %2145 = vmatpush1.bf16.msra.mxu0 %v1873
    %2146 = vmatprep.subr.bf16.mxu0 %v1881
    %2147 = vmatpush1.bf16.msra.mxu0 %v1880
    %2148 = vmatprep.subr.bf16.mxu0 %v1888
    %2149 = vmatpush1.bf16.msra.mxu0 %v1887
    %2150 = vmatprep.subr.bf16.mxu0 %v1895
    %2151 = vmatpush1.bf16.msra.mxu0 %v1894
    %2152 = vmatprep.subr.bf16.mxu0 %v1902
    %2153 = vmatpush1.bf16.msra.mxu0 %v1901
    %2154 = vmatprep.mubr.bf16.mxu0 %v1401
    %2155 = vmatmul.mubr.bf16.gmra.mrb[0].mxu0 %v1400
    %v2156 = vpop.f32.mrb[0].mxu0
    %v2157 = vadd.f32 %v1424, %v2156
    %v2158 = vpop.f32.mrb[0].mxu0
    %v2159 = vadd.f32 %v1428, %v2158
    %v2160 = vpop.f32.mrb[0].mxu0
    %v2161 = vadd.f32 %v1424, %v2160
    %v2162 = vpop.f32.mrb[0].mxu0
    %v2163 = vadd.f32 %v1428, %v2162
    %2164 = vmatprep.mubr.bf16.mxu0 %v1403
    %2165 = vmatmul.mubr.bf16.gmra.mrb[0].mxu0 %v1402
    %v2166 = vpop.f32.mrb[0].mxu0
    %v2167 = vadd.f32 %v1424, %v2166
    %v2168 = vpop.f32.mrb[0].mxu0
    %v2169 = vadd.f32 %v1428, %v2168
    %v2170 = vpop.f32.mrb[0].mxu0
    %v2171 = vadd.f32 %v1424, %v2170
    %v2172 = vpop.f32.mrb[0].mxu0
    %v2173 = vadd.f32 %v1428, %v2172
    %2174 = vdwg.mxu0
    %2175 = vmatprep.subr.bf16.mxu0 0
    %2176 = vmatpush1.bf16.msra.mxu0 %v1798
    %2177 = vmatprep.subr.bf16.mxu0 0
    %2178 = vmatpush1.bf16.msra.mxu0 %v1805
    %2179 = vmatprep.subr.bf16.mxu0 0
    %2180 = vmatpush1.bf16.msra.mxu0 %v1812
    %2181 = vmatprep.subr.bf16.mxu0 0
    %2182 = vmatpush1.bf16.msra.mxu0 %v1819
    %2183 = vmatprep.subr.bf16.mxu0 0
    %2184 = vmatpush1.bf16.msra.mxu0 %v1826
    %2185 = vmatprep.subr.bf16.mxu0 0
    %2186 = vmatpush1.bf16.msra.mxu0 %v1833
    %2187 = vmatprep.subr.bf16.mxu0 0
    %2188 = vmatpush1.bf16.msra.mxu0 %v1840
    %2189 = vmatprep.subr.bf16.mxu0 0
    %2190 = vmatpush1.bf16.msra.mxu0 %v1847
    %2191 = vmatprep.subr.bf16.mxu0 0
    %2192 = vmatpush1.bf16.msra.mxu0 %v1854
    %2193 = vmatprep.subr.bf16.mxu0 0
    %2194 = vmatpush1.bf16.msra.mxu0 %v1861
    %2195 = vmatprep.subr.bf16.mxu0 0
    %2196 = vmatpush1.bf16.msra.mxu0 %v1868
    %2197 = vmatprep.subr.bf16.mxu0 0
    %2198 = vmatpush1.bf16.msra.mxu0 %v1875
    %2199 = vmatprep.subr.bf16.mxu0 0
    %2200 = vmatpush1.bf16.msra.mxu0 %v1882
    %2201 = vmatprep.subr.bf16.mxu0 0
    %2202 = vmatpush1.bf16.msra.mxu0 %v1889
    %2203 = vmatprep.subr.bf16.mxu0 0
    %2204 = vmatpush1.bf16.msra.mxu0 %v1896
    %2205 = vmatprep.subr.bf16.mxu0 0
    %2206 = vmatpush1.bf16.msra.mxu0 %v1903
    %2207 = vmatprep.mubr.bf16.mxu0 %v1401
    %2208 = vmatmul.mubr.bf16.gmra.mrb[0].mxu0 %v1400
    %v2209 = vpop.f32.mrb[0].mxu0
    %v2210 = vadd.f32 %v1432, %v2209
    %v2211 = vpop.f32.mrb[0].mxu0
    %v2212 = vpop.f32.mrb[0].mxu0
    %v2213 = vadd.f32 %v1432, %v2212
    %v2214 = vpop.f32.mrb[0].mxu0
    %2215 = vmatprep.mubr.bf16.mxu0 %v1403
    %2216 = vmatmul.mubr.bf16.gmra.mrb[0].mxu0 %v1402
    %v2217 = vpop.f32.mrb[0].mxu0
    %v2218 = vadd.f32 %v1432, %v2217
    %v2219 = vpop.f32.mrb[0].mxu0
    %v2220 = vpop.f32.mrb[0].mxu0
    %v2221 = vadd.f32 %v1432, %v2220
    %v2222 = vpop.f32.mrb[0].mxu0
    %2223 = vdwg.mxu0
    %v2224 = vtanh.pop %v2051
    %v2225 = vtanh.pop %v2053
    %v2226 = vtanh.pop %v2104
    %v2227 = vtanh.pop %v2106
    %v2228 = vtanh.pop %v2157
    %v2229 = vtanh.pop %v2159
    %v2230 = vtanh.pop %v2210
    %v2231 = vtanh.pop %v2055
    %v2232 = vtanh.pop %v2057
    %v2233 = vtanh.pop %v2108
    %v2234 = vtanh.pop %v2110
    %v2235 = vtanh.pop %v2161
    %v2236 = vtanh.pop %v2163
    %v2237 = vtanh.pop %v2213
    %v2238 = vtanh.pop %v2061
    %v2239 = vtanh.pop %v2063
    %v2240 = vtanh.pop %v2114
    %v2241 = vtanh.pop %v2116
    %v2242 = vtanh.pop %v2167
    %v2243 = vtanh.pop %v2169
    %v2244 = vtanh.pop %v2218
    %v2245 = vtanh.pop %v2065
    %v2246 = vtanh.pop %v2067
    %v2247 = vtanh.pop %v2118
    %v2248 = vtanh.pop %v2120
    %v2249 = vtanh.pop %v2171
    %v2250 = vtanh.pop %v2173
    %v2251 = vtanh.pop %v2221
    %2252 = vst [vmem:[#allocation7] sm:$0xff] %v2224
    %2253 = vst [vmem:[#allocation7 + $0x8] sm:$0xff] %v2225
    %2254 = vst [vmem:[#allocation7 + $0x10] sm:$0xff] %v2226
    %2255 = vst [vmem:[#allocation7 + $0x18] sm:$0xff] %v2227
    %2256 = vst [vmem:[#allocation7 + $0x20] sm:$0xff] %v2228
    %2257 = vst [vmem:[#allocation7 + $0x28] sm:$0xff] %v2229
    %2258 = vst [vmem:[#allocation7 + $0x30] sm:$0xff] %v2230
    %2259 = vst [vmem:[#allocation7 + $0x38] sm:$0xff] %v2231
    %2260 = vst [vmem:[#allocation7 + $0x40] sm:$0xff] %v2232
    %2261 = vst [vmem:[#allocation7 + $0x48] sm:$0xff] %v2233
    %2262 = vst [vmem:[#allocation7 + $0x50] sm:$0xff] %v2234
    %2263 = vst [vmem:[#allocation7 + $0x58] sm:$0xff] %v2235
    %2264 = vst [vmem:[#allocation7 + $0x60] sm:$0xff] %v2236
    %2265 = vst [vmem:[#allocation7 + $0x68] sm:$0xff] %v2237
    %2266 = vst [vmem:[#allocation7 + $0x70] sm:$0xff] %v2238
    %2267 = vst [vmem:[#allocation7 + $0x78] sm:$0xff] %v2239
    %2268 = vst [vmem:[#allocation7 + $0x80] sm:$0xff] %v2240
    %2269 = vst [vmem:[#allocation7 + $0x88] sm:$0xff] %v2241
    %2270 = vst [vmem:[#allocation7 + $0x90] sm:$0xff] %v2242
    %2271 = vst [vmem:[#allocation7 + $0x98] sm:$0xff] %v2243
    %2272 = vst [vmem:[#allocation7 + $0xa0] sm:$0xff] %v2244
    %2273 = vst [vmem:[#allocation7 + $0xa8] sm:$0xff] %v2245
    %2274 = vst [vmem:[#allocation7 + $0xb0] sm:$0xff] %v2246
    %2275 = vst [vmem:[#allocation7 + $0xb8] sm:$0xff] %v2247
    %2276 = vst [vmem:[#allocation7 + $0xc0] sm:$0xff] %v2248
    %2277 = vst [vmem:[#allocation7 + $0xc8] sm:$0xff] %v2249
    %2278 = vst [vmem:[#allocation7 + $0xd0] sm:$0xff] %v2250
    %2279 = vst [vmem:[#allocation7 + $0xd8] sm:$0xff] %v2251
    %v2280 = vld [vmem:[%s0 + $0xe0] sm:$0xff]
    %v2281 = vld [vmem:[%s0 + $0xe8] sm:$0xff]
    %v2282 = vld [vmem:[%s0 + $0xf0] sm:$0xff]
    %v2283 = vld [vmem:[%s0 + $0xf8] sm:$0xff]
    %v2284 = vld [vmem:[%s0 + $0x100] sm:$0xff]
    %v2285 = vld [vmem:[%s0 + $0x108] sm:$0xff]
    %v2286 = vld [vmem:[%s0 + $0x110] sm:$0xff]
    %v2287 = vld [vmem:[%s0 + $0x118] sm:$0xff]
    %v2288 = vld [vmem:[%s0 + $0x120] sm:$0xff]
    %v2289 = vld [vmem:[%s0 + $0x128] sm:$0xff]
    %v2290 = vld [vmem:[%s0 + $0x130] sm:$0xff]
    %v2291 = vld [vmem:[%s0 + $0x138] sm:$0xff]
    %v2292 = vld [vmem:[%s0 + $0x140] sm:$0xff]
    %v2293 = vld [vmem:[%s0 + $0x148] sm:$0xff]
    %v2294 = vld [vmem:[%s0 + $0x150] sm:$0xff]
    %v2295 = vld [vmem:[%s0 + $0x158] sm:$0xff]
    %v2296 = vld [vmem:[%s0 + $0x160] sm:$0xff]
    %v2297 = vld [vmem:[%s0 + $0x168] sm:$0xff]
    %v2298 = vld [vmem:[%s0 + $0x170] sm:$0xff]
    %v2299 = vld [vmem:[%s0 + $0x178] sm:$0xff]
    %v2300 = vld [vmem:[%s0 + $0x180] sm:$0xff]
    %v2301 = vld [vmem:[%s0 + $0x188] sm:$0xff]
    %v2302 = vld [vmem:[%s0 + $0x190] sm:$0xff]
    %v2303 = vld [vmem:[%s0 + $0x198] sm:$0xff]
    %v2304 = vld [vmem:[%s0 + $0x1a0] sm:$0xff]
    %v2305 = vld [vmem:[%s0 + $0x1a8] sm:$0xff]
    %v2306 = vld [vmem:[%s0 + $0x1b0] sm:$0xff]
    %v2307 = vld [vmem:[%s0 + $0x1b8] sm:$0xff]
    %v2308 = vpack.c.bf16 %v2287, %v2280
    %v2309 = vpack.c.bf16 %v2288, %v2281
    %v2310 = vpack.c.bf16 %v2289, %v2282
    %v2311 = vpack.c.bf16 %v2290, %v2283
    %v2312 = vpack.c.bf16 %v2291, %v2284
    %v2313 = vpack.c.bf16 %v2292, %v2285
    %v2314 = vpack.c.bf16 %v2293, %v2286
    %v2315 = vpack.c.bf16 %v2301, %v2294
    %v2316 = vpack.c.bf16 %v2302, %v2295
    %v2317 = vpack.c.bf16 %v2303, %v2296
    %v2318 = vpack.c.bf16 %v2304, %v2297
    %v2319 = vpack.c.bf16 %v2305, %v2298
    %v2320 = vpack.c.bf16 %v2306, %v2299
    %v2321 = vpack.c.bf16 %v2307, %v2300
    %2322 = vmatprep.subr.bf16.mxu0 %v721
    %2323 = vmatpush1.bf16.msra.mxu0 %v720
    %2324 = vmatprep.subr.bf16.mxu0 %v723
    %2325 = vmatpush1.bf16.msra.mxu0 %v722
    %2326 = vmatprep.subr.bf16.mxu0 %v725
    %2327 = vmatpush1.bf16.msra.mxu0 %v724
    %2328 = vmatprep.subr.bf16.mxu0 %v727
    %2329 = vmatpush1.bf16.msra.mxu0 %v726
    %2330 = vmatprep.subr.bf16.mxu0 %v729
    %2331 = vmatpush1.bf16.msra.mxu0 %v728
    %2332 = vmatprep.subr.bf16.mxu0 %v731
    %2333 = vmatpush1.bf16.msra.mxu0 %v730
    %2334 = vmatprep.subr.bf16.mxu0 %v733
    %2335 = vmatpush1.bf16.msra.mxu0 %v732
    %2336 = vmatprep.subr.bf16.mxu0 %v735
    %2337 = vmatpush1.bf16.msra.mxu0 %v734
    %2338 = vmatprep.subr.bf16.mxu0 %v737
    %2339 = vmatpush1.bf16.msra.mxu0 %v736
    %2340 = vmatprep.subr.bf16.mxu0 %v739
    %2341 = vmatpush1.bf16.msra.mxu0 %v738
    %2342 = vmatprep.subr.bf16.mxu0 %v741
    %2343 = vmatpush1.bf16.msra.mxu0 %v740
    %2344 = vmatprep.subr.bf16.mxu0 %v743
    %2345 = vmatpush1.bf16.msra.mxu0 %v742
    %2346 = vmatprep.subr.bf16.mxu0 %v745
    %2347 = vmatpush1.bf16.msra.mxu0 %v744
    %2348 = vmatprep.subr.bf16.mxu0 %v747
    %2349 = vmatpush1.bf16.msra.mxu0 %v746
    %2350 = vmatprep.subr.bf16.mxu0 %v749
    %2351 = vmatpush1.bf16.msra.mxu0 %v748
    %2352 = vmatprep.subr.bf16.mxu0 %v751
    %2353 = vmatpush1.bf16.msra.mxu0 %v750
    %2354 = vmatprep.mubr.bf16.mxu0 %v2309
    %2355 = vmatmul.mubr.bf16.gmra.mrb[0].mxu0 %v2308
    %v2356 = vpop.f32.mrb[0].mxu0
    %v2357 = vadd.f32 %v377, %v2356
    %v2358 = vpop.f32.mrb[0].mxu0
    %v2359 = vadd.f32 %v381, %v2358
    %v2360 = vpop.f32.mrb[0].mxu0
    %v2361 = vadd.f32 %v377, %v2360
    %v2362 = vpop.f32.mrb[0].mxu0
    %v2363 = vadd.f32 %v381, %v2362
    %2364 = vmatprep.mubr.bf16.mxu0 %v2316
    %2365 = vmatmul.mubr.bf16.gmra.mrb[0].mxu0 %v2315
    %v2366 = vpop.f32.mrb[0].mxu0
    %v2367 = vadd.f32 %v377, %v2366
    %v2368 = vpop.f32.mrb[0].mxu0
    %v2369 = vadd.f32 %v381, %v2368
    %v2370 = vpop.f32.mrb[0].mxu0
    %v2371 = vadd.f32 %v377, %v2370
    %v2372 = vpop.f32.mrb[0].mxu0
    %v2373 = vadd.f32 %v381, %v2372
    %2374 = vdwg.mxu0
    %2375 = vmatprep.subr.bf16.mxu0 %v753
    %2376 = vmatpush1.bf16.msra.mxu0 %v752
    %2377 = vmatprep.subr.bf16.mxu0 %v755
    %2378 = vmatpush1.bf16.msra.mxu0 %v754
    %2379 = vmatprep.subr.bf16.mxu0 %v757
    %2380 = vmatpush1.bf16.msra.mxu0 %v756
    %2381 = vmatprep.subr.bf16.mxu0 %v759
    %2382 = vmatpush1.bf16.msra.mxu0 %v758
    %2383 = vmatprep.subr.bf16.mxu0 %v761
    %2384 = vmatpush1.bf16.msra.mxu0 %v760
    %2385 = vmatprep.subr.bf16.mxu0 %v763
    %2386 = vmatpush1.bf16.msra.mxu0 %v762
    %2387 = vmatprep.subr.bf16.mxu0 %v765
    %2388 = vmatpush1.bf16.msra.mxu0 %v764
    %2389 = vmatprep.subr.bf16.mxu0 %v767
    %2390 = vmatpush1.bf16.msra.mxu0 %v766
    %2391 = vmatprep.subr.bf16.mxu0 %v769
    %2392 = vmatpush1.bf16.msra.mxu0 %v768
    %2393 = vmatprep.subr.bf16.mxu0 %v771
    %2394 = vmatpush1.bf16.msra.mxu0 %v770
    %2395 = vmatprep.subr.bf16.mxu0 %v773
    %2396 = vmatpush1.bf16.msra.mxu0 %v772
    %2397 = vmatprep.subr.bf16.mxu0 %v775
    %2398 = vmatpush1.bf16.msra.mxu0 %v774
    %2399 = vmatprep.subr.bf16.mxu0 %v777
    %2400 = vmatpush1.bf16.msra.mxu0 %v776
    %2401 = vmatprep.subr.bf16.mxu0 %v779
    %2402 = vmatpush1.bf16.msra.mxu0 %v778
    %2403 = vmatprep.subr.bf16.mxu0 %v781
    %2404 = vmatpush1.bf16.msra.mxu0 %v780
    %2405 = vmatprep.subr.bf16.mxu0 %v783
    %2406 = vmatpush1.bf16.msra.mxu0 %v782
    %2407 = vmatprep.mubr.bf16.mxu0 %v2311
    %2408 = vmatmul.mubr.bf16.gmra.mrb[0].mxu0 %v2310
    %v2409 = vpop.f32.mrb[0].mxu0
    %v2410 = vadd.f32 %v2357, %v2409
    %v2411 = vpop.f32.mrb[0].mxu0
    %v2412 = vadd.f32 %v2359, %v2411
    %v2413 = vpop.f32.mrb[0].mxu0
    %v2414 = vadd.f32 %v2361, %v2413
    %v2415 = vpop.f32.mrb[0].mxu0
    %v2416 = vadd.f32 %v2363, %v2415
    %2417 = vmatprep.mubr.bf16.mxu0 %v2318
    %2418 = vmatmul.mubr.bf16.gmra.mrb[0].mxu0 %v2317
    %v2419 = vpop.f32.mrb[0].mxu0
    %v2420 = vadd.f32 %v2367, %v2419
    %v2421 = vpop.f32.mrb[0].mxu0
    %v2422 = vadd.f32 %v2369, %v2421
    %v2423 = vpop.f32.mrb[0].mxu0
    %v2424 = vadd.f32 %v2371, %v2423
    %v2425 = vpop.f32.mrb[0].mxu0
    %v2426 = vadd.f32 %v2373, %v2425
    %2427 = vdwg.mxu0
    %2428 = vmatprep.subr.bf16.mxu0 %v785
    %2429 = vmatpush1.bf16.msra.mxu0 %v784
    %2430 = vmatprep.subr.bf16.mxu0 %v787
    %2431 = vmatpush1.bf16.msra.mxu0 %v786
    %2432 = vmatprep.subr.bf16.mxu0 %v789
    %2433 = vmatpush1.bf16.msra.mxu0 %v788
    %2434 = vmatprep.subr.bf16.mxu0 %v791
    %2435 = vmatpush1.bf16.msra.mxu0 %v790
    %2436 = vmatprep.subr.bf16.mxu0 %v793
    %2437 = vmatpush1.bf16.msra.mxu0 %v792
    %2438 = vmatprep.subr.bf16.mxu0 %v795
    %2439 = vmatpush1.bf16.msra.mxu0 %v794
    %2440 = vmatprep.subr.bf16.mxu0 %v797
    %2441 = vmatpush1.bf16.msra.mxu0 %v796
    %2442 = vmatprep.subr.bf16.mxu0 %v799
    %2443 = vmatpush1.bf16.msra.mxu0 %v798
    %2444 = vmatprep.subr.bf16.mxu0 %v801
    %2445 = vmatpush1.bf16.msra.mxu0 %v800
    %2446 = vmatprep.subr.bf16.mxu0 %v803
    %2447 = vmatpush1.bf16.msra.mxu0 %v802
    %2448 = vmatprep.subr.bf16.mxu0 %v805
    %2449 = vmatpush1.bf16.msra.mxu0 %v804
    %2450 = vmatprep.subr.bf16.mxu0 %v807
    %2451 = vmatpush1.bf16.msra.mxu0 %v806
    %2452 = vmatprep.subr.bf16.mxu0 %v809
    %2453 = vmatpush1.bf16.msra.mxu0 %v808
    %2454 = vmatprep.subr.bf16.mxu0 %v811
    %2455 = vmatpush1.bf16.msra.mxu0 %v810
    %2456 = vmatprep.subr.bf16.mxu0 %v813
    %2457 = vmatpush1.bf16.msra.mxu0 %v812
    %2458 = vmatprep.subr.bf16.mxu0 %v815
    %2459 = vmatpush1.bf16.msra.mxu0 %v814
    %2460 = vmatprep.mubr.bf16.mxu0 %v2313
    %2461 = vmatmul.mubr.bf16.gmra.mrb[0].mxu0 %v2312
    %v2462 = vpop.f32.mrb[0].mxu0
    %v2463 = vadd.f32 %v2410, %v2462
    %v2464 = vpop.f32.mrb[0].mxu0
    %v2465 = vadd.f32 %v2412, %v2464
    %v2466 = vpop.f32.mrb[0].mxu0
    %v2467 = vadd.f32 %v2414, %v2466
    %v2468 = vpop.f32.mrb[0].mxu0
    %v2469 = vadd.f32 %v2416, %v2468
    %2470 = vmatprep.mubr.bf16.mxu0 %v2320
    %2471 = vmatmul.mubr.bf16.gmra.mrb[0].mxu0 %v2319
    %v2472 = vpop.f32.mrb[0].mxu0
    %v2473 = vadd.f32 %v2420, %v2472
    %v2474 = vpop.f32.mrb[0].mxu0
    %v2475 = vadd.f32 %v2422, %v2474
    %v2476 = vpop.f32.mrb[0].mxu0
    %v2477 = vadd.f32 %v2424, %v2476
    %v2478 = vpop.f32.mrb[0].mxu0
    %v2479 = vadd.f32 %v2426, %v2478
    %2480 = vdwg.mxu0
    %2481 = vmatprep.subr.bf16.mxu0 %v817
    %2482 = vmatpush1.bf16.msra.mxu0 %v816
    %2483 = vmatprep.subr.bf16.mxu0 %v819
    %2484 = vmatpush1.bf16.msra.mxu0 %v818
    %2485 = vmatprep.subr.bf16.mxu0 %v821
    %2486 = vmatpush1.bf16.msra.mxu0 %v820
    %2487 = vmatprep.subr.bf16.mxu0 %v823
    %2488 = vmatpush1.bf16.msra.mxu0 %v822
    %2489 = vmatprep.subr.bf16.mxu0 %v825
    %2490 = vmatpush1.bf16.msra.mxu0 %v824
    %2491 = vmatprep.subr.bf16.mxu0 %v827
    %2492 = vmatpush1.bf16.msra.mxu0 %v826
    %2493 = vmatprep.subr.bf16.mxu0 %v829
    %2494 = vmatpush1.bf16.msra.mxu0 %v828
    %2495 = vmatprep.subr.bf16.mxu0 %v831
    %2496 = vmatpush1.bf16.msra.mxu0 %v830
    %2497 = vmatprep.subr.bf16.mxu0 0
    %2498 = vmatpush1.bf16.msra.mxu0 0
    %2499 = vmatprep.subr.bf16.mxu0 0
    %2500 = vmatpush1.bf16.msra.mxu0 0
    %2501 = vmatprep.subr.bf16.mxu0 0
    %2502 = vmatpush1.bf16.msra.mxu0 0
    %2503 = vmatprep.subr.bf16.mxu0 0
    %2504 = vmatpush1.bf16.msra.mxu0 0
    %2505 = vmatprep.subr.bf16.mxu0 0
    %2506 = vmatpush1.bf16.msra.mxu0 0
    %2507 = vmatprep.subr.bf16.mxu0 0
    %2508 = vmatpush1.bf16.msra.mxu0 0
    %2509 = vmatprep.subr.bf16.mxu0 0
    %2510 = vmatpush1.bf16.msra.mxu0 0
    %2511 = vmatprep.subr.bf16.mxu0 0
    %2512 = vmatpush1.bf16.msra.mxu0 0
    %2513 = vmatprep.mubr.bf16.mxu0 0
    %2514 = vmatmul.mubr.bf16.gmra.mrb[0].mxu0 %v2314
    %v2515 = vpop.f32.mrb[0].mxu0
    %v2516 = vadd.f32 %v2463, %v2515
    %v2517 = vpop.f32.mrb[0].mxu0
    %v2518 = vadd.f32 %v2465, %v2517
    %v2519 = vpop.f32.mrb[0].mxu0
    %v2520 = vadd.f32 %v2467, %v2519
    %v2521 = vpop.f32.mrb[0].mxu0
    %v2522 = vadd.f32 %v2469, %v2521
    %2523 = vmatprep.mubr.bf16.mxu0 0
    %2524 = vmatmul.mubr.bf16.gmra.mrb[0].mxu0 %v2321
    %v2525 = vpop.f32.mrb[0].mxu0
    %v2526 = vadd.f32 %v2473, %v2525
    %v2527 = vpop.f32.mrb[0].mxu0
    %v2528 = vadd.f32 %v2475, %v2527
    %v2529 = vpop.f32.mrb[0].mxu0
    %v2530 = vadd.f32 %v2477, %v2529
    %v2531 = vpop.f32.mrb[0].mxu0
    %v2532 = vadd.f32 %v2479, %v2531
    %2533 = vdwg.mxu0
    %v2534 = vmax.f32 %v2516, 0.0
    %v2535 = vmax.f32 %v2518, 0.0
    %v2536 = vmax.f32 %v2520, 0.0
    %v2537 = vmax.f32 %v2522, 0.0
    %v2538 = vmax.f32 %v2526, 0.0
    %v2539 = vmax.f32 %v2528, 0.0
    %v2540 = vmax.f32 %v2530, 0.0
    %v2541 = vmax.f32 %v2532, 0.0
    %v2542 = vpack.c.bf16 %v2536, %v2534
    %v2543 = vpack.c.bf16 %v2537, %v2535
    %v2544 = vpack.c.bf16 %v2540, %v2538
    %v2545 = vpack.c.bf16 %v2541, %v2539
    %2546 = vmatprep.subr.bf16.mxu0 %v1276
    %2547 = vmatpush1.bf16.msra.mxu0 %v1275
    %2548 = vmatprep.subr.bf16.mxu0 %v1278
    %2549 = vmatpush1.bf16.msra.mxu0 %v1277
    %2550 = vmatprep.subr.bf16.mxu0 %v1280
    %2551 = vmatpush1.bf16.msra.mxu0 %v1279
    %2552 = vmatprep.subr.bf16.mxu0 %v1282
    %2553 = vmatpush1.bf16.msra.mxu0 %v1281
    %2554 = vmatprep.subr.bf16.mxu0 %v1284
    %2555 = vmatpush1.bf16.msra.mxu0 %v1283
    %2556 = vmatprep.subr.bf16.mxu0 %v1286
    %2557 = vmatpush1.bf16.msra.mxu0 %v1285
    %2558 = vmatprep.subr.bf16.mxu0 %v1288
    %2559 = vmatpush1.bf16.msra.mxu0 %v1287
    %2560 = vmatprep.subr.bf16.mxu0 %v1290
    %2561 = vmatpush1.bf16.msra.mxu0 %v1289
    %2562 = vmatprep.subr.bf16.mxu0 %v1292
    %2563 = vmatpush1.bf16.msra.mxu0 %v1291
    %2564 = vmatprep.subr.bf16.mxu0 %v1294
    %2565 = vmatpush1.bf16.msra.mxu0 %v1293
    %2566 = vmatprep.subr.bf16.mxu0 %v1296
    %2567 = vmatpush1.bf16.msra.mxu0 %v1295
    %2568 = vmatprep.subr.bf16.mxu0 %v1298
    %2569 = vmatpush1.bf16.msra.mxu0 %v1297
    %2570 = vmatprep.subr.bf16.mxu0 %v1300
    %2571 = vmatpush1.bf16.msra.mxu0 %v1299
    %2572 = vmatprep.subr.bf16.mxu0 %v1302
    %2573 = vmatpush1.bf16.msra.mxu0 %v1301
    %2574 = vmatprep.subr.bf16.mxu0 %v1304
    %2575 = vmatpush1.bf16.msra.mxu0 %v1303
    %2576 = vmatprep.subr.bf16.mxu0 %v1306
    %2577 = vmatpush1.bf16.msra.mxu0 %v1305
    %2578 = vmatprep.mubr.bf16.mxu0 %v2543
    %2579 = vmatmul.mubr.bf16.gmra.mrb[0].mxu0 %v2542
    %v2580 = vpop.f32.mrb[0].mxu0
    %v2581 = vadd.f32 %v1172, %v2580
    %v2582 = vpop.f32.mrb[0].mxu0
    %v2583 = vadd.f32 %v1176, %v2582
    %v2584 = vpop.f32.mrb[0].mxu0
    %v2585 = vadd.f32 %v1172, %v2584
    %v2586 = vpop.f32.mrb[0].mxu0
    %v2587 = vadd.f32 %v1176, %v2586
    %2588 = vmatprep.mubr.bf16.mxu0 %v2545
    %2589 = vmatmul.mubr.bf16.gmra.mrb[0].mxu0 %v2544
    %v2590 = vpop.f32.mrb[0].mxu0
    %v2591 = vadd.f32 %v1172, %v2590
    %v2592 = vpop.f32.mrb[0].mxu0
    %v2593 = vadd.f32 %v1176, %v2592
    %v2594 = vpop.f32.mrb[0].mxu0
    %v2595 = vadd.f32 %v1172, %v2594
    %v2596 = vpop.f32.mrb[0].mxu0
    %v2597 = vadd.f32 %v1176, %v2596
    %2598 = vdwg.mxu0
    %v2599 = vmax.f32 %v2581, 0.0
    %v2600 = vmax.f32 %v2583, 0.0
    %v2601 = vmax.f32 %v2585, 0.0
    %v2602 = vmax.f32 %v2587, 0.0
    %v2603 = vmax.f32 %v2591, 0.0
    %v2604 = vmax.f32 %v2593, 0.0
    %v2605 = vmax.f32 %v2595, 0.0
    %v2606 = vmax.f32 %v2597, 0.0
    %v2607 = vpack.c.bf16 %v2601, %v2599
    %v2608 = vpack.c.bf16 %v2602, %v2600
    %v2609 = vpack.c.bf16 %v2605, %v2603
    %v2610 = vpack.c.bf16 %v2606, %v2604
    %2611 = vmatprep.subr.bf16.mxu0 %v1793
    %2612 = vmatpush1.bf16.msra.mxu0 %v1792
    %2613 = vmatprep.subr.bf16.mxu0 %v1800
    %2614 = vmatpush1.bf16.msra.mxu0 %v1799
    %2615 = vmatprep.subr.bf16.mxu0 %v1807
    %2616 = vmatpush1.bf16.msra.mxu0 %v1806
    %2617 = vmatprep.subr.bf16.mxu0 %v1814
    %2618 = vmatpush1.bf16.msra.mxu0 %v1813
    %2619 = vmatprep.subr.bf16.mxu0 %v1821
    %2620 = vmatpush1.bf16.msra.mxu0 %v1820
    %2621 = vmatprep.subr.bf16.mxu0 %v1828
    %2622 = vmatpush1.bf16.msra.mxu0 %v1827
    %2623 = vmatprep.subr.bf16.mxu0 %v1835
    %2624 = vmatpush1.bf16.msra.mxu0 %v1834
    %2625 = vmatprep.subr.bf16.mxu0 %v1842
    %2626 = vmatpush1.bf16.msra.mxu0 %v1841
    %2627 = vmatprep.subr.bf16.mxu0 %v1849
    %2628 = vmatpush1.bf16.msra.mxu0 %v1848
    %2629 = vmatprep.subr.bf16.mxu0 %v1856
    %2630 = vmatpush1.bf16.msra.mxu0 %v1855
    %2631 = vmatprep.subr.bf16.mxu0 %v1863
    %2632 = vmatpush1.bf16.msra.mxu0 %v1862
    %2633 = vmatprep.subr.bf16.mxu0 %v1870
    %2634 = vmatpush1.bf16.msra.mxu0 %v1869
    %2635 = vmatprep.subr.bf16.mxu0 %v1877
    %2636 = vmatpush1.bf16.msra.mxu0 %v1876
    %2637 = vmatprep.subr.bf16.mxu0 %v1884
    %2638 = vmatpush1.bf16.msra.mxu0 %v1883
    %2639 = vmatprep.subr.bf16.mxu0 %v1891
    %2640 = vmatpush1.bf16.msra.mxu0 %v1890
    %2641 = vmatprep.subr.bf16.mxu0 %v1898
    %2642 = vmatpush1.bf16.msra.mxu0 %v1897
    %2643 = vmatprep.mubr.bf16.mxu0 %v2608
    %2644 = vmatmul.mubr.bf16.gmra.mrb[0].mxu0 %v2607
    %v2645 = vpop.f32.mrb[0].mxu0
    %v2646 = vadd.f32 %v1408, %v2645
    %v2647 = vpop.f32.mrb[0].mxu0
    %v2648 = vadd.f32 %v1412, %v2647
    %v2649 = vpop.f32.mrb[0].mxu0
    %v2650 = vadd.f32 %v1408, %v2649
    %v2651 = vpop.f32.mrb[0].mxu0
    %v2652 = vadd.f32 %v1412, %v2651
    %2653 = vmatprep.mubr.bf16.mxu0 %v2610
    %2654 = vmatmul.mubr.bf16.gmra.mrb[0].mxu0 %v2609
    %v2655 = vpop.f32.mrb[0].mxu0
    %v2656 = vadd.f32 %v1408, %v2655
    %v2657 = vpop.f32.mrb[0].mxu0
    %v2658 = vadd.f32 %v1412, %v2657
    %v2659 = vpop.f32.mrb[0].mxu0
    %v2660 = vadd.f32 %v1408, %v2659
    %v2661 = vpop.f32.mrb[0].mxu0
    %v2662 = vadd.f32 %v1412, %v2661
    %2663 = vdwg.mxu0
    %2664 = vmatprep.subr.bf16.mxu0 %v1795
    %2665 = vmatpush1.bf16.msra.mxu0 %v1794
    %2666 = vmatprep.subr.bf16.mxu0 %v1802
    %2667 = vmatpush1.bf16.msra.mxu0 %v1801
    %2668 = vmatprep.subr.bf16.mxu0 %v1809
    %2669 = vmatpush1.bf16.msra.mxu0 %v1808
    %2670 = vmatprep.subr.bf16.mxu0 %v1816
    %2671 = vmatpush1.bf16.msra.mxu0 %v1815
    %2672 = vmatprep.subr.bf16.mxu0 %v1823
    %2673 = vmatpush1.bf16.msra.mxu0 %v1822
    %2674 = vmatprep.subr.bf16.mxu0 %v1830
    %2675 = vmatpush1.bf16.msra.mxu0 %v1829
    %2676 = vmatprep.subr.bf16.mxu0 %v1837
    %2677 = vmatpush1.bf16.msra.mxu0 %v1836
    %2678 = vmatprep.subr.bf16.mxu0 %v1844
    %2679 = vmatpush1.bf16.msra.mxu0 %v1843
    %2680 = vmatprep.subr.bf16.mxu0 %v1851
    %2681 = vmatpush1.bf16.msra.mxu0 %v1850
    %2682 = vmatprep.subr.bf16.mxu0 %v1858
    %2683 = vmatpush1.bf16.msra.mxu0 %v1857
    %2684 = vmatprep.subr.bf16.mxu0 %v1865
    %2685 = vmatpush1.bf16.msra.mxu0 %v1864
    %2686 = vmatprep.subr.bf16.mxu0 %v1872
    %2687 = vmatpush1.bf16.msra.mxu0 %v1871
    %2688 = vmatprep.subr.bf16.mxu0 %v1879
    %2689 = vmatpush1.bf16.msra.mxu0 %v1878
    %2690 = vmatprep.subr.bf16.mxu0 %v1886
    %2691 = vmatpush1.bf16.msra.mxu0 %v1885
    %2692 = vmatprep.subr.bf16.mxu0 %v1893
    %2693 = vmatpush1.bf16.msra.mxu0 %v1892
    %2694 = vmatprep.subr.bf16.mxu0 %v1900
    %2695 = vmatpush1.bf16.msra.mxu0 %v1899
    %2696 = vmatprep.mubr.bf16.mxu0 %v2608
    %2697 = vmatmul.mubr.bf16.gmra.mrb[0].mxu0 %v2607
    %v2698 = vpop.f32.mrb[0].mxu0
    %v2699 = vadd.f32 %v1416, %v2698
    %v2700 = vpop.f32.mrb[0].mxu0
    %v2701 = vadd.f32 %v1420, %v2700
    %v2702 = vpop.f32.mrb[0].mxu0
    %v2703 = vadd.f32 %v1416, %v2702
    %v2704 = vpop.f32.mrb[0].mxu0
    %v2705 = vadd.f32 %v1420, %v2704
    %2706 = vmatprep.mubr.bf16.mxu0 %v2610
    %2707 = vmatmul.mubr.bf16.gmra.mrb[0].mxu0 %v2609
    %v2708 = vpop.f32.mrb[0].mxu0
    %v2709 = vadd.f32 %v1416, %v2708
    %v2710 = vpop.f32.mrb[0].mxu0
    %v2711 = vadd.f32 %v1420, %v2710
    %v2712 = vpop.f32.mrb[0].mxu0
    %v2713 = vadd.f32 %v1416, %v2712
    %v2714 = vpop.f32.mrb[0].mxu0
    %v2715 = vadd.f32 %v1420, %v2714
    %2716 = vdwg.mxu0
    %2717 = vmatprep.subr.bf16.mxu0 %v1797
    %2718 = vmatpush1.bf16.msra.mxu0 %v1796
    %2719 = vmatprep.subr.bf16.mxu0 %v1804
    %2720 = vmatpush1.bf16.msra.mxu0 %v1803
    %2721 = vmatprep.subr.bf16.mxu0 %v1811
    %2722 = vmatpush1.bf16.msra.mxu0 %v1810
    %2723 = vmatprep.subr.bf16.mxu0 %v1818
    %2724 = vmatpush1.bf16.msra.mxu0 %v1817
    %2725 = vmatprep.subr.bf16.mxu0 %v1825
    %2726 = vmatpush1.bf16.msra.mxu0 %v1824
    %2727 = vmatprep.subr.bf16.mxu0 %v1832
    %2728 = vmatpush1.bf16.msra.mxu0 %v1831
    %2729 = vmatprep.subr.bf16.mxu0 %v1839
    %2730 = vmatpush1.bf16.msra.mxu0 %v1838
    %2731 = vmatprep.subr.bf16.mxu0 %v1846
    %2732 = vmatpush1.bf16.msra.mxu0 %v1845
    %2733 = vmatprep.subr.bf16.mxu0 %v1853
    %2734 = vmatpush1.bf16.msra.mxu0 %v1852
    %2735 = vmatprep.subr.bf16.mxu0 %v1860
    %2736 = vmatpush1.bf16.msra.mxu0 %v1859
    %2737 = vmatprep.subr.bf16.mxu0 %v1867
    %2738 = vmatpush1.bf16.msra.mxu0 %v1866
    %2739 = vmatprep.subr.bf16.mxu0 %v1874
    %2740 = vmatpush1.bf16.msra.mxu0 %v1873
    %2741 = vmatprep.subr.bf16.mxu0 %v1881
    %2742 = vmatpush1.bf16.msra.mxu0 %v1880
    %2743 = vmatprep.subr.bf16.mxu0 %v1888
    %2744 = vmatpush1.bf16.msra.mxu0 %v1887
    %2745 = vmatprep.subr.bf16.mxu0 %v1895
    %2746 = vmatpush1.bf16.msra.mxu0 %v1894
    %2747 = vmatprep.subr.bf16.mxu0 %v1902
    %2748 = vmatpush1.bf16.msra.mxu0 %v1901
    %2749 = vmatprep.mubr.bf16.mxu0 %v2608
    %2750 = vmatmul.mubr.bf16.gmra.mrb[0].mxu0 %v2607
    %v2751 = vpop.f32.mrb[0].mxu0
    %v2752 = vadd.f32 %v1424, %v2751
    %v2753 = vpop.f32.mrb[0].mxu0
    %v2754 = vadd.f32 %v1428, %v2753
    %v2755 = vpop.f32.mrb[0].mxu0
    %v2756 = vadd.f32 %v1424, %v2755
    %v2757 = vpop.f32.mrb[0].mxu0
    %v2758 = vadd.f32 %v1428, %v2757
    %2759 = vmatprep.mubr.bf16.mxu0 %v2610
    %2760 = vmatmul.mubr.bf16.gmra.mrb[0].mxu0 %v2609
    %v2761 = vpop.f32.mrb[0].mxu0
    %v2762 = vadd.f32 %v1424, %v2761
    %v2763 = vpop.f32.mrb[0].mxu0
    %v2764 = vadd.f32 %v1428, %v2763
    %v2765 = vpop.f32.mrb[0].mxu0
    %v2766 = vadd.f32 %v1424, %v2765
    %v2767 = vpop.f32.mrb[0].mxu0
    %v2768 = vadd.f32 %v1428, %v2767
    %2769 = vdwg.mxu0
    %2770 = vmatprep.subr.bf16.mxu0 0
    %2771 = vmatpush1.bf16.msra.mxu0 %v1798
    %2772 = vmatprep.subr.bf16.mxu0 0
    %2773 = vmatpush1.bf16.msra.mxu0 %v1805
    %2774 = vmatprep.subr.bf16.mxu0 0
    %2775 = vmatpush1.bf16.msra.mxu0 %v1812
    %2776 = vmatprep.subr.bf16.mxu0 0
    %2777 = vmatpush1.bf16.msra.mxu0 %v1819
    %2778 = vmatprep.subr.bf16.mxu0 0
    %2779 = vmatpush1.bf16.msra.mxu0 %v1826
    %2780 = vmatprep.subr.bf16.mxu0 0
    %2781 = vmatpush1.bf16.msra.mxu0 %v1833
    %2782 = vmatprep.subr.bf16.mxu0 0
    %2783 = vmatpush1.bf16.msra.mxu0 %v1840
    %2784 = vmatprep.subr.bf16.mxu0 0
    %2785 = vmatpush1.bf16.msra.mxu0 %v1847
    %2786 = vmatprep.subr.bf16.mxu0 0
    %2787 = vmatpush1.bf16.msra.mxu0 %v1854
    %2788 = vmatprep.subr.bf16.mxu0 0
    %2789 = vmatpush1.bf16.msra.mxu0 %v1861
    %2790 = vmatprep.subr.bf16.mxu0 0
    %2791 = vmatpush1.bf16.msra.mxu0 %v1868
    %2792 = vmatprep.subr.bf16.mxu0 0
    %2793 = vmatpush1.bf16.msra.mxu0 %v1875
    %2794 = vmatprep.subr.bf16.mxu0 0
    %2795 = vmatpush1.bf16.msra.mxu0 %v1882
    %2796 = vmatprep.subr.bf16.mxu0 0
    %2797 = vmatpush1.bf16.msra.mxu0 %v1889
    %2798 = vmatprep.subr.bf16.mxu0 0
    %2799 = vmatpush1.bf16.msra.mxu0 %v1896
    %2800 = vmatprep.subr.bf16.mxu0 0
    %2801 = vmatpush1.bf16.msra.mxu0 %v1903
    %2802 = vmatprep.mubr.bf16.mxu0 %v2608
    %2803 = vmatmul.mubr.bf16.gmra.mrb[0].mxu0 %v2607
    %v2804 = vpop.f32.mrb[0].mxu0
    %v2805 = vadd.f32 %v1432, %v2804
    %v2806 = vpop.f32.mrb[0].mxu0
    %v2807 = vpop.f32.mrb[0].mxu0
    %v2808 = vadd.f32 %v1432, %v2807
    %v2809 = vpop.f32.mrb[0].mxu0
    %2810 = vmatprep.mubr.bf16.mxu0 %v2610
    %2811 = vmatmul.mubr.bf16.gmra.mrb[0].mxu0 %v2609
    %v2812 = vpop.f32.mrb[0].mxu0
    %v2813 = vadd.f32 %v1432, %v2812
    %v2814 = vpop.f32.mrb[0].mxu0
    %v2815 = vpop.f32.mrb[0].mxu0
    %v2816 = vadd.f32 %v1432, %v2815
    %v2817 = vpop.f32.mrb[0].mxu0
    %2818 = vdwg.mxu0
    %v2819 = vtanh.pop %v2646
    %v2820 = vtanh.pop %v2648
    %v2821 = vtanh.pop %v2699
    %v2822 = vtanh.pop %v2701
    %v2823 = vtanh.pop %v2752
    %v2824 = vtanh.pop %v2754
    %v2825 = vtanh.pop %v2805
    %v2826 = vtanh.pop %v2650
    %v2827 = vtanh.pop %v2652
    %v2828 = vtanh.pop %v2703
    %v2829 = vtanh.pop %v2705
    %v2830 = vtanh.pop %v2756
    %v2831 = vtanh.pop %v2758
    %v2832 = vtanh.pop %v2808
    %v2833 = vtanh.pop %v2656
    %v2834 = vtanh.pop %v2658
    %v2835 = vtanh.pop %v2709
    %v2836 = vtanh.pop %v2711
    %v2837 = vtanh.pop %v2762
    %v2838 = vtanh.pop %v2764
    %v2839 = vtanh.pop %v2813
    %v2840 = vtanh.pop %v2660
    %v2841 = vtanh.pop %v2662
    %v2842 = vtanh.pop %v2713
    %v2843 = vtanh.pop %v2715
    %v2844 = vtanh.pop %v2766
    %v2845 = vtanh.pop %v2768
    %v2846 = vtanh.pop %v2816
    %2847 = vst [vmem:[#allocation7 + $0xe0] sm:$0xff] %v2819
    %2848 = vst [vmem:[#allocation7 + $0xe8] sm:$0xff] %v2820
    %2849 = vst [vmem:[#allocation7 + $0xf0] sm:$0xff] %v2821
    %2850 = vst [vmem:[#allocation7 + $0xf8] sm:$0xff] %v2822
    %2851 = vst [vmem:[#allocation7 + $0x100] sm:$0xff] %v2823
    %2852 = vst [vmem:[#allocation7 + $0x108] sm:$0xff] %v2824
    %2853 = vst [vmem:[#allocation7 + $0x110] sm:$0xff] %v2825
    %2854 = vst [vmem:[#allocation7 + $0x118] sm:$0xff] %v2826
    %2855 = vst [vmem:[#allocation7 + $0x120] sm:$0xff] %v2827
    %2856 = vst [vmem:[#allocation7 + $0x128] sm:$0xff] %v2828
    %2857 = vst [vmem:[#allocation7 + $0x130] sm:$0xff] %v2829
    %2858 = vst [vmem:[#allocation7 + $0x138] sm:$0xff] %v2830
    %2859 = vst [vmem:[#allocation7 + $0x140] sm:$0xff] %v2831
    %2860 = vst [vmem:[#allocation7 + $0x148] sm:$0xff] %v2832
    %2861 = vst [vmem:[#allocation7 + $0x150] sm:$0xff] %v2833
    %2862 = vst [vmem:[#allocation7 + $0x158] sm:$0xff] %v2834
    %2863 = vst [vmem:[#allocation7 + $0x160] sm:$0xff] %v2835
    %2864 = vst [vmem:[#allocation7 + $0x168] sm:$0xff] %v2836
    %2865 = vst [vmem:[#allocation7 + $0x170] sm:$0xff] %v2837
    %2866 = vst [vmem:[#allocation7 + $0x178] sm:$0xff] %v2838
    %2867 = vst [vmem:[#allocation7 + $0x180] sm:$0xff] %v2839
    %2868 = vst [vmem:[#allocation7 + $0x188] sm:$0xff] %v2840
    %2869 = vst [vmem:[#allocation7 + $0x190] sm:$0xff] %v2841
    %2870 = vst [vmem:[#allocation7 + $0x198] sm:$0xff] %v2842
    %2871 = vst [vmem:[#allocation7 + $0x1a0] sm:$0xff] %v2843
    %2872 = vst [vmem:[#allocation7 + $0x1a8] sm:$0xff] %v2844
    %2873 = vst [vmem:[#allocation7 + $0x1b0] sm:$0xff] %v2845
    %2874 = vst [vmem:[#allocation7 + $0x1b8] sm:$0xff] %v2846
    // Predicated region
    $region38: #{generator_forward.1} parent=1 // pred_check
      _
    $region39: #{generator_forward.1} parent=1 // pred_check_branch
      %2876 = sbr.rel (0) target = $region41
    $region40: #{generator_forward.1} parent=1 // pred_region
      %s2878 = ssub.s32 7168, 7168
      %2879 = vsyncadd [#allocation4], %s2878
      %s2880 = sshll.u32 [#allocation7], 4
      %s2881 = int_to_ptr.vmem [resolvable:$true] %s2880
      %2886 = dma.vmem_to_hbm [thread:$0]  %s2881, 7168, %s7, [#allocation4], 896, 896, 56
    $region41: #{generator_forward.1} parent=1 // pred_fallthru
      _
    // Predicated region
    $region42: #{generator_forward.1} parent=1 // pred_check
      _
    $region43: #{generator_forward.1} parent=1 // pred_check_branch
      %2888 = sbr.rel (0) target = $region45
    $region44: #{generator_forward.1} parent=1 // pred_region
      %2889 = dma.done [#allocation4], 7168
    $region45: #{generator_forward.1} parent=1 // pred_fallthru
      _
    %2890 = vsyncpa [#allocation3], 1
    %2891 = vsyncpa [#allocation6], 1
    %2892 = vsyncpa [#allocation4], 1

</llo_original>
